<compile_context>
chip_gen: v6e
topology: v6e:2x2x1
jax: 0.10.0
libtpu: 0.0.40
codegen_flags: <defaults>
</compile_context>

<pallas_src>
import jax
import jax.numpy as jnp
from jax import lax
from jax.experimental import pallas as pl
from jax.experimental.pallas import tpu as pltpu

# ---------------- model sizes (small, consistent with the forward) ----------
SRC_VOCAB = 16
TRG_VOCAB = 16
EMB = 32
HID = 32
SRC_LEN = 8
TRG_LEN = 8
BATCH = 8          # multiple of 8 -> full f32 sublane tiles
VPAD = 128         # vocab padded to one full lane width (lane-dense stores)
GPAD = 128         # 3*HID = 96 gate lanes padded to one full lane width


def _vmem():
    return pl.BlockSpec(memory_space=pltpu.MemorySpace.VMEM)


# --------------------------- fused seq2seq kernel ----------------------------
def seq2seq_kernel(emb_src_ref, tok0_ref,
                   enc_wih_ref, enc_bi_ref, enc_whh_ref, enc_bhn_ref,
                   tok_gates_ref, tok_logits_ref,
                   dec_whh_ref, dec_wihc_ref, dec_b_ref, dec_bhn_ref,
                   out_wh_ref, out_wc_ref, out_b_ref,
                   out_ref,
                   enc_ref, gi_ref):
    T, B, VP = out_ref.shape
    S = enc_ref.shape[0]
    H = enc_ref.shape[2]

    # ---- encoder input-side gate terms hoisted out of the recurrence --------
    # one [S*B, E] @ [E, GPAD] matmul; fused r/z biases already include b_hh.
    gi_ref[...] = (
        jnp.dot(emb_src_ref[...], enc_wih_ref[...],
                preferred_element_type=jnp.float32)
        + enc_bi_ref[...])

    def gru_fused(gi, gh, h, b_hn):
        # gi/gh are lane-stacked [B, GPAD]: [r | z | n | pad]
        r = jax.nn.sigmoid(gi[:, 0:H] + gh[:, 0:H])
        z = jax.nn.sigmoid(gi[:, H:2 * H] + gh[:, H:2 * H])
        n = jnp.tanh(gi[:, 2 * H:3 * H] + r * (gh[:, 2 * H:3 * H] + b_hn))
        return (1.0 - z) * n + z * h

    # ---------------- encoder GRU recurrence (1 MXU matmul / step) -----------
    def enc_step(t, h):
        start = pl.multiple_of(t * B, B)
        gi = gi_ref[pl.ds(start, B), :]                               # [B, GPAD]
        gh = jnp.dot(h, enc_whh_ref[...], preferred_element_type=jnp.float32)
        h_new = gru_fused(gi, gh, h, enc_bhn_ref[...])
        enc_ref[t] = h_new                                            # [B, H]
        return h_new

    hidden0 = lax.fori_loop(0, S, enc_step, jnp.zeros((B, H), jnp.float32))

    # ---------------- greedy decode loop (argmax feedback in-kernel) ---------
    out_ref[0] = jnp.zeros((B, VP), jnp.float32)       # row 0 stays zero

    lane = lax.broadcasted_iota(jnp.int32, (B, VP), 1)
    valid = lane < TRG_VOCAB
    onehot0 = (tok0_ref[...] == lane).astype(jnp.float32)            # [B, VPAD]

    def dec_step(t, carry):
        hidden, onehot = carry

        # token-dependent MXU work: depends only on previous token, issues first
        tok_gates = jnp.dot(onehot, tok_gates_ref[...],
                            preferred_element_type=jnp.float32)      # [B, GPAD]
        tok_logits = jnp.dot(onehot, tok_logits_ref[...],
                             preferred_element_type=jnp.float32)     # [B, VPAD]
        # hidden-side gates: depends only on carried hidden, issues before attention
        gh = jnp.dot(hidden, dec_whh_ref[...],
                     preferred_element_type=jnp.float32)             # [B, GPAD]

        # dot-product attention on VPU/XLU, S statically unrolled
        enc_s = [enc_ref[s] for s in range(S)]                       # each [B, H]
        scores = jnp.concatenate(
            [jnp.sum(e * hidden, axis=-1, keepdims=True) for e in enc_s],
            axis=-1)                                                  # [B, S]
        scores = scores - jnp.max(scores, axis=-1, keepdims=True)
        exp_s = jnp.exp(scores)
        att = exp_s * pl.reciprocal(jnp.sum(exp_s, axis=-1, keepdims=True),
                                    approx=True)                      # [B, S]
        context = att[:, 0:1] * enc_s[0]
        for s in range(1, S):
            context = context + att[:, s:s + 1] * enc_s[s]            # [B, H]

        # context-side gates + GRU update
        gc = jnp.dot(context, dec_wihc_ref[...],
                     preferred_element_type=jnp.float32)              # [B, GPAD]
        gi = tok_gates + gc + dec_b_ref[...]
        h_new = gru_fused(gi, gh, hidden, dec_bhn_ref[...])

        # vocab projection on [h_new ; context ; embedded(folded)]; lane-dense
        logits = (jnp.dot(h_new, out_wh_ref[...],
                          preferred_element_type=jnp.float32)
                  + jnp.dot(context, out_wc_ref[...],
                            preferred_element_type=jnp.float32)
                  + tok_logits + out_b_ref[...])                      # [B, VPAD]
        out_ref[t] = logits

        # greedy argmax over real vocab lanes (first-max tie-break, like torch)
        masked = jnp.where(valid, logits, jnp.float32(-1e30))
        m = jnp.max(masked, axis=-1, keepdims=True)
        cand = jnp.where(masked == m, lane, VP)
        first = jnp.min(cand, axis=-1, keepdims=True)
        onehot_next = (lane == first).astype(jnp.float32)
        return (h_new, onehot_next)

    lax.fori_loop(1, T, dec_step, (hidden0, onehot0))


# ------------------------------- Seq2Seq wrapper ------------------------------
def seq2seq_forward(src, trg, params):
    """Mirrors Seq2Seq.forward with teacher_forcing_ratio=0.0 (greedy decode)."""
    trg_len, batch = trg.shape
    src_len = src.shape[0]

    # encoder embedding gather done in the wrapper, flattened to [S*B, E] so the
    # kernel's hoisted gate matmul needs no in-kernel reshape.
    emb_src = jnp.take(params['emb_enc'], src.reshape(-1), axis=0)    # [S*B, E]
    tok0 = trg[0].astype(jnp.int32).reshape(batch, 1)                 # [B, 1]

    # TODO(synk): for v7x, add a leading "parallel" grid axis over batch groups
    # of 8 (dimension_semantics=("parallel",)) once batch > one sublane tile.
    out_pad = pl.pallas_call(
        seq2seq_kernel,
        out_shape=jax.ShapeDtypeStruct((trg_len, batch, VPAD), jnp.float32),
        in_specs=[_vmem()] * 15,
        out_specs=_vmem(),
        scratch_shapes=[
            pltpu.VMEM((src_len, batch, HID), jnp.float32),           # enc outs [S,B,H]
            pltpu.VMEM((src_len * batch, GPAD), jnp.float32),         # hoisted enc gates
        ],
    )(emb_src, tok0,
      params['enc_w_ih_f'], params['enc_b_i_f'],
      params['enc_w_hh_f'], params['enc_b_hn'],
      params['w_tok_gates'], params['w_tok_logits'],
      params['dec_w_hh_f'], params['dec_w_ihc_f'],
      params['dec_b_f'], params['dec_b_hn'],
      params['out_w_h'], params['out_w_c'], params['out_b'])

    return out_pad[:, :, :TRG_VOCAB]                                  # [T, B, trg_vocab]


# --------------------------- deterministic params ----------------------------
def init_params(key):
    ks = iter(jax.random.split(key, 40))

    def w(shape, scale=0.1):
        return (scale * jax.random.normal(next(ks), shape)).astype(jnp.float32)

    def fuse_gates(mats):  # 3 x [in, H] -> [in, GPAD] lane-stacked (r|z|n|0)
        m = jnp.concatenate(mats, axis=-1)
        return jnp.pad(m, [(0, 0)] * (m.ndim - 1) + [(0, GPAD - 3 * HID)])

    def pad_lanes(x, width):
        return jnp.pad(x, [(0, 0)] * (x.ndim - 1) + [(0, width - x.shape[-1])])

    emb_enc = w((SRC_VOCAB, EMB))
    emb_dec = w((TRG_VOCAB, EMB))
    emb_dec_pad = jnp.pad(emb_dec, ((0, VPAD - TRG_VOCAB), (0, 0)))   # [VPAD, E]

    # raw per-gate GRU weights (PyTorch GRUCell math, [in, H] layout)
    e_wi = [w((EMB, HID)) for _ in range(3)]     # r, z, n
    e_wh = [w((HID, HID)) for _ in range(3)]
    e_bi = [w((1, HID)) for _ in range(3)]
    e_bh = [w((1, HID)) for _ in range(3)]

    d_wi_e = [w((EMB, HID)) for _ in range(3)]   # input = [embedded ; context]
    d_wi_c = [w((HID, HID)) for _ in range(3)]
    d_wh = [w((HID, HID)) for _ in range(3)]
    d_bi = [w((1, HID)) for _ in range(3)]
    d_bh = [w((1, HID)) for _ in range(3)]

    o_wh = w((HID, TRG_VOCAB))
    o_wc = w((HID, TRG_VOCAB))
    o_we = w((EMB, TRG_VOCAB))
    o_b = w((1, TRG_VOCAB))

    # ---- fused / folded forms consumed by the kernel ------------------------
    enc_w_ih_f = fuse_gates(e_wi)                                     # [E, GPAD]
    enc_w_hh_f = fuse_gates(e_wh)                                     # [H, GPAD]
    enc_b_i_f = fuse_gates([e_bi[0] + e_bh[0], e_bi[1] + e_bh[1], e_bi[2]])
    enc_b_hn = e_bh[2]                                                # [1, H]

    dec_w_ihe_f = fuse_gates(d_wi_e)                                  # [E, GPAD]
    dec_w_ihc_f = fuse_gates(d_wi_c)                                  # [H, GPAD]
    dec_w_hh_f = fuse_gates(d_wh)                                     # [H, GPAD]
    dec_b_f = fuse_gates([d_bi[0] + d_bh[0], d_bi[1] + d_bh[1], d_bi[2]])
    dec_b_hn = d_bh[2]                                                # [1, H]

    # fold decoder embedding through the gate / output-projection weights
    w_tok_gates = emb_dec_pad @ dec_w_ihe_f                           # [VPAD, GPAD]
    w_tok_logits = emb_dec_pad @ pad_lanes(o_we, VPAD)                # [VPAD, VPAD]

    return dict(
        emb_enc=emb_enc,
        enc_w_ih_f=enc_w_ih_f, enc_b_i_f=enc_b_i_f,
        enc_w_hh_f=enc_w_hh_f, enc_b_hn=enc_b_hn,
        w_tok_gates=w_tok_gates, w_tok_logits=w_tok_logits,
        dec_w_hh_f=dec_w_hh_f, dec_w_ihc_f=dec_w_ihc_f,
        dec_b_f=dec_b_f, dec_b_hn=dec_bhn if False else dec_b_hn,
        out_w_h=pad_lanes(o_wh, VPAD),
        out_w_c=pad_lanes(o_wc, VPAD),
        out_b=pad_lanes(o_b, VPAD),
    )


if __name__ == "__main__":
    key = jax.random.PRNGKey(0)
    k_src, k_trg, k_par = jax.random.split(key, 3)
    params = init_params(k_par)

    src = jax.random.randint(k_src, (SRC_LEN, BATCH), 0, SRC_VOCAB, dtype=jnp.int32)
    trg = jax.random.randint(k_trg, (TRG_LEN, BATCH), 0, TRG_VOCAB, dtype=jnp.int32)

    fwd = jax.jit(seq2seq_forward)
    outputs = fwd(src, trg, params)
    jax.block_until_ready(outputs)

    assert outputs.shape == (TRG_LEN, BATCH, TRG_VOCAB)
    assert bool(jnp.all(outputs[0] == 0.0))   # row 0 untouched, like torch.zeros
    print("KERNEL_OK")
</pallas_src>

<mosaic_0001>
module attributes {stable_mosaic.version = 11 : i64} {
  func.func @seq2seq_kernel(%arg0: memref<64x32xf32, #tpu.memory_space<vmem>>, %arg1: memref<8x1xi32, #tpu.memory_space<vmem>>, %arg2: memref<32x128xf32, #tpu.memory_space<vmem>>, %arg3: memref<1x128xf32, #tpu.memory_space<vmem>>, %arg4: memref<32x128xf32, #tpu.memory_space<vmem>>, %arg5: memref<1x32xf32, #tpu.memory_space<vmem>>, %arg6: memref<128x128xf32, #tpu.memory_space<vmem>>, %arg7: memref<128x128xf32, #tpu.memory_space<vmem>>, %arg8: memref<32x128xf32, #tpu.memory_space<vmem>>, %arg9: memref<32x128xf32, #tpu.memory_space<vmem>>, %arg10: memref<1x128xf32, #tpu.memory_space<vmem>>, %arg11: memref<1x32xf32, #tpu.memory_space<vmem>>, %arg12: memref<32x128xf32, #tpu.memory_space<vmem>>, %arg13: memref<32x128xf32, #tpu.memory_space<vmem>>, %arg14: memref<1x128xf32, #tpu.memory_space<vmem>>, %arg15: memref<8x8x128xf32, #tpu.memory_space<vmem>>, %arg16: memref<8x8x32xf32, #tpu.memory_space<vmem>>, %arg17: memref<64x128xf32, #tpu.memory_space<vmem>>) attributes {dimension_semantics = [], scalar_prefetch = 0 : i64, scratch_operands = 2 : i64, tpu.core_type = #tpu.core_type<tc>} {
    %c0 = arith.constant 0 : index
    %c0_0 = arith.constant 0 : index
    %0 = vector.load %arg0[%c0, %c0_0] : memref<64x32xf32, #tpu.memory_space<vmem>>, vector<64x32xf32>
    %c0_1 = arith.constant 0 : index
    %c0_2 = arith.constant 0 : index
    %1 = vector.load %arg2[%c0_1, %c0_2] : memref<32x128xf32, #tpu.memory_space<vmem>>, vector<32x128xf32>
    %cst = arith.constant dense<0.000000e+00> : vector<64x128xf32>
    %2 = tpu.matmul %0, %1, %cst {dimension_numbers = #tpu.dot_dimension_numbers<[1], [0], [0], [1], [0, 0, 1, 1], [], []>} : vector<64x32xf32>, vector<32x128xf32>, vector<64x128xf32> -> vector<64x128xf32>
    %c0_3 = arith.constant 0 : index
    %c0_4 = arith.constant 0 : index
    %3 = vector.load %arg3[%c0_3, %c0_4] : memref<1x128xf32, #tpu.memory_space<vmem>>, vector<1x128xf32>
    %4 = vector.broadcast %3 : vector<1x128xf32> to vector<64x128xf32>
    %5 = arith.addf %2, %4 : vector<64x128xf32>
    %c0_5 = arith.constant 0 : index
    %c0_6 = arith.constant 0 : index
    %6 = vector.load %arg17[%c0_5, %c0_6] : memref<64x128xf32, #tpu.memory_space<vmem>>, vector<64x128xf32>
    tpu.vector_store %arg17[%c0_5, %c0_6], %5 {strides = array<i32>} : memref<64x128xf32, #tpu.memory_space<vmem>>, vector<64x128xf32>,
    %cst_7 = arith.constant 0.000000e+00 : f32
    %7 = vector.broadcast %cst_7 : f32 to vector<8x32xf32>
    %c0_i32 = arith.constant 0 : i32
    %c8_i32 = arith.constant 8 : i32
    %8 = arith.addi %c0_i32, %c8_i32 : i32
    %c1_i32 = arith.constant 1 : i32
    %9 = scf.for %arg18 = %c0_i32 to %8 step %c1_i32 iter_args(%arg19 = %7) -> (vector<8x32xf32>)  : i32 {
      %c8_i32_18 = arith.constant 8 : i32
      %24 = arith.muli %arg18, %c8_i32_18 : i32
      %25 = tpu.assume_multiple %24, 8 : i32
      %26 = arith.index_cast %25 : i32 to index
      %c0_19 = arith.constant 0 : index
      %27 = vector.load %arg17[%26, %c0_19] : memref<64x128xf32, #tpu.memory_space<vmem>>, vector<8x128xf32>
      %c0_20 = arith.constant 0 : index
      %c0_21 = arith.constant 0 : index
      %28 = vector.load %arg4[%c0_20, %c0_21] : memref<32x128xf32, #tpu.memory_space<vmem>>, vector<32x128xf32>
      %cst_22 = arith.constant dense<0.000000e+00> : vector<8x128xf32>
      %29 = tpu.matmul %arg19, %28, %cst_22 {dimension_numbers = #tpu.dot_dimension_numbers<[1], [0], [0], [1], [0, 0, 1, 1], [], []>} : vector<8x32xf32>, vector<32x128xf32>, vector<8x128xf32> -> vector<8x128xf32>
      %c0_23 = arith.constant 0 : index
      %c0_24 = arith.constant 0 : index
      %30 = vector.load %arg5[%c0_23, %c0_24] : memref<1x32xf32, #tpu.memory_space<vmem>>, vector<1x32xf32>
      %31 = vector.extract_strided_slice %27 {offsets = [0, 0], sizes = [8, 32], strides = [1, 1]} : vector<8x128xf32> to vector<8x32xf32>
      %32 = vector.extract_strided_slice %29 {offsets = [0, 0], sizes = [8, 32], strides = [1, 1]} : vector<8x128xf32> to vector<8x32xf32>
      %33 = arith.addf %31, %32 : vector<8x32xf32>
      %34 = arith.negf %33 : vector<8x32xf32>
      %35 = math.exp %34 : vector<8x32xf32>
      %cst_25 = arith.constant 1.000000e+00 : f32
      %36 = vector.broadcast %cst_25 : f32 to vector<8x32xf32>
      %37 = arith.addf %36, %35 : vector<8x32xf32>
      %38 = arith.divf %36, %37 : vector<8x32xf32>
      %39 = vector.extract_strided_slice %27 {offsets = [0, 32], sizes = [8, 32], strides = [1, 1]} : vector<8x128xf32> to vector<8x32xf32>
      %40 = vector.extract_strided_slice %29 {offsets = [0, 32], sizes = [8, 32], strides = [1, 1]} : vector<8x128xf32> to vector<8x32xf32>
      %41 = arith.addf %39, %40 : vector<8x32xf32>
      %42 = arith.negf %41 : vector<8x32xf32>
      %43 = math.exp %42 : vector<8x32xf32>
      %cst_26 = arith.constant 1.000000e+00 : f32
      %44 = vector.broadcast %cst_26 : f32 to vector<8x32xf32>
      %45 = arith.addf %44, %43 : vector<8x32xf32>
      %46 = arith.divf %44, %45 : vector<8x32xf32>
      %47 = vector.extract_strided_slice %27 {offsets = [0, 64], sizes = [8, 32], strides = [1, 1]} : vector<8x128xf32> to vector<8x32xf32>
      %48 = vector.extract_strided_slice %29 {offsets = [0, 64], sizes = [8, 32], strides = [1, 1]} : vector<8x128xf32> to vector<8x32xf32>
      %49 = vector.broadcast %30 : vector<1x32xf32> to vector<8x32xf32>
      %50 = arith.addf %48, %49 : vector<8x32xf32>
      %51 = arith.mulf %38, %50 : vector<8x32xf32>
      %52 = arith.addf %47, %51 : vector<8x32xf32>
      %53 = math.tanh %52 : vector<8x32xf32>
      %cst_27 = arith.constant 1.000000e+00 : f32
      %54 = vector.broadcast %cst_27 : f32 to vector<8x32xf32>
      %55 = arith.subf %54, %46 : vector<8x32xf32>
      %56 = arith.mulf %55, %53 : vector<8x32xf32>
      %57 = arith.mulf %46, %arg19 : vector<8x32xf32>
      %58 = arith.addf %56, %57 : vector<8x32xf32>
      %59 = arith.index_cast %arg18 : i32 to index
      %c0_28 = arith.constant 0 : index
      %c0_29 = arith.constant 0 : index
      %60 = vector.load %arg16[%59, %c0_28, %c0_29] : memref<8x8x32xf32, #tpu.memory_space<vmem>>, vector<1x8x32xf32>
      %61 = vector.shape_cast %60 : vector<1x8x32xf32> to vector<8x32xf32>
      %62 = vector.shape_cast %58 : vector<8x32xf32> to vector<1x8x32xf32>
      tpu.vector_store %arg16[%59, %c0_28, %c0_29], %62 {strides = array<i32>} : memref<8x8x32xf32, #tpu.memory_space<vmem>>, vector<1x8x32xf32>,
      scf.yield %58 : vector<8x32xf32>
    }
    %c8_i32_8 = arith.constant 8 : i32
    %cst_9 = arith.constant 0.000000e+00 : f32
    %10 = vector.broadcast %cst_9 : f32 to vector<8x128xf32>
    %c0_10 = arith.constant 0 : index
    %c0_11 = arith.constant 0 : index
    %c0_12 = arith.constant 0 : index
    %11 = vector.load %arg15[%c0_10, %c0_11, %c0_12] : memref<8x8x128xf32, #tpu.memory_space<vmem>>, vector<1x8x128xf32>
    %12 = vector.shape_cast %11 : vector<1x8x128xf32> to vector<8x128xf32>
    %13 = vector.shape_cast %10 : vector<8x128xf32> to vector<1x8x128xf32>
    tpu.vector_store %arg15[%c0_10, %c0_11, %c0_12], %13 {strides = array<i32>} : memref<8x8x128xf32, #tpu.memory_space<vmem>>, vector<1x8x128xf32>,
    %14 = tpu.iota {dimensions = array<i32: 1>} : vector<8x128xi32>
    %c16_i32 = arith.constant 16 : i32
    %15 = vector.broadcast %c16_i32 : i32 to vector<8x128xi32>
    %16 = arith.cmpi slt, %14, %15 : vector<8x128xi32>
    %c0_13 = arith.constant 0 : index
    %c0_14 = arith.constant 0 : index
    %17 = vector.load %arg1[%c0_13, %c0_14] : memref<8x1xi32, #tpu.memory_space<vmem>>, vector<8x1xi32>
    %18 = vector.broadcast %17 : vector<8x1xi32> to vector<8x128xi32>
    %19 = arith.cmpi eq, %18, %14 : vector<8x128xi32>
    %20 = arith.extui %19 : vector<8x128xi1> to vector<8x128xi32>
    %21 = arith.sitofp %20 : vector<8x128xi32> to vector<8x128xf32>
    %c1_i32_15 = arith.constant 1 : i32
    %c7_i32 = arith.constant 7 : i32
    %22 = arith.addi %c1_i32_15, %c7_i32 : i32
    %c1_i32_16 = arith.constant 1 : i32
    %23:2 = scf.for %arg18 = %c1_i32_15 to %22 step %c1_i32_16 iter_args(%arg19 = %9, %arg20 = %21) -> (vector<8x32xf32>, vector<8x128xf32>)  : i32 {
      %c0_18 = arith.constant 0 : index
      %c0_19 = arith.constant 0 : index
      %24 = vector.load %arg6[%c0_18, %c0_19] : memref<128x128xf32, #tpu.memory_space<vmem>>, vector<128x128xf32>
      %cst_20 = arith.constant dense<0.000000e+00> : vector<8x128xf32>
      %25 = tpu.matmul %arg20, %24, %cst_20 {dimension_numbers = #tpu.dot_dimension_numbers<[1], [0], [0], [1], [0, 0, 1, 1], [], []>} : vector<8x128xf32>, vector<128x128xf32>, vector<8x128xf32> -> vector<8x128xf32>
      %c0_21 = arith.constant 0 : index
      %c0_22 = arith.constant 0 : index
      %26 = vector.load %arg7[%c0_21, %c0_22] : memref<128x128xf32, #tpu.memory_space<vmem>>, vector<128x128xf32>
      %cst_23 = arith.constant dense<0.000000e+00> : vector<8x128xf32>
      %27 = tpu.matmul %arg20, %26, %cst_23 {dimension_numbers = #tpu.dot_dimension_numbers<[1], [0], [0], [1], [0, 0, 1, 1], [], []>} : vector<8x128xf32>, vector<128x128xf32>, vector<8x128xf32> -> vector<8x128xf32>
      %c0_24 = arith.constant 0 : index
      %c0_25 = arith.constant 0 : index
      %28 = vector.load %arg8[%c0_24, %c0_25] : memref<32x128xf32, #tpu.memory_space<vmem>>, vector<32x128xf32>
      %cst_26 = arith.constant dense<0.000000e+00> : vector<8x128xf32>
      %29 = tpu.matmul %arg19, %28, %cst_26 {dimension_numbers = #tpu.dot_dimension_numbers<[1], [0], [0], [1], [0, 0, 1, 1], [], []>} : vector<8x32xf32>, vector<32x128xf32>, vector<8x128xf32> -> vector<8x128xf32>
      %c0_27 = arith.constant 0 : index
      %c0_28 = arith.constant 0 : index
      %c0_29 = arith.constant 0 : index
      %30 = vector.load %arg16[%c0_27, %c0_28, %c0_29] : memref<8x8x32xf32, #tpu.memory_space<vmem>>, vector<1x8x32xf32>
      %31 = vector.shape_cast %30 : vector<1x8x32xf32> to vector<8x32xf32>
      %c1 = arith.constant 1 : index
      %c0_30 = arith.constant 0 : index
      %c0_31 = arith.constant 0 : index
      %32 = vector.load %arg16[%c1, %c0_30, %c0_31] : memref<8x8x32xf32, #tpu.memory_space<vmem>>, vector<1x8x32xf32>
      %33 = vector.shape_cast %32 : vector<1x8x32xf32> to vector<8x32xf32>
      %c2 = arith.constant 2 : index
      %c0_32 = arith.constant 0 : index
      %c0_33 = arith.constant 0 : index
      %34 = vector.load %arg16[%c2, %c0_32, %c0_33] : memref<8x8x32xf32, #tpu.memory_space<vmem>>, vector<1x8x32xf32>
      %35 = vector.shape_cast %34 : vector<1x8x32xf32> to vector<8x32xf32>
      %c3 = arith.constant 3 : index
      %c0_34 = arith.constant 0 : index
      %c0_35 = arith.constant 0 : index
      %36 = vector.load %arg16[%c3, %c0_34, %c0_35] : memref<8x8x32xf32, #tpu.memory_space<vmem>>, vector<1x8x32xf32>
      %37 = vector.shape_cast %36 : vector<1x8x32xf32> to vector<8x32xf32>
      %c4 = arith.constant 4 : index
      %c0_36 = arith.constant 0 : index
      %c0_37 = arith.constant 0 : index
      %38 = vector.load %arg16[%c4, %c0_36, %c0_37] : memref<8x8x32xf32, #tpu.memory_space<vmem>>, vector<1x8x32xf32>
      %39 = vector.shape_cast %38 : vector<1x8x32xf32> to vector<8x32xf32>
      %c5 = arith.constant 5 : index
      %c0_38 = arith.constant 0 : index
      %c0_39 = arith.constant 0 : index
      %40 = vector.load %arg16[%c5, %c0_38, %c0_39] : memref<8x8x32xf32, #tpu.memory_space<vmem>>, vector<1x8x32xf32>
      %41 = vector.shape_cast %40 : vector<1x8x32xf32> to vector<8x32xf32>
      %c6 = arith.constant 6 : index
      %c0_40 = arith.constant 0 : index
      %c0_41 = arith.constant 0 : index
      %42 = vector.load %arg16[%c6, %c0_40, %c0_41] : memref<8x8x32xf32, #tpu.memory_space<vmem>>, vector<1x8x32xf32>
      %43 = vector.shape_cast %42 : vector<1x8x32xf32> to vector<8x32xf32>
      %c7 = arith.constant 7 : index
      %c0_42 = arith.constant 0 : index
      %c0_43 = arith.constant 0 : index
      %44 = vector.load %arg16[%c7, %c0_42, %c0_43] : memref<8x8x32xf32, #tpu.memory_space<vmem>>, vector<1x8x32xf32>
      %45 = vector.shape_cast %44 : vector<1x8x32xf32> to vector<8x32xf32>
      %46 = arith.mulf %31, %arg19 : vector<8x32xf32>
      %cst_44 = arith.constant dense<0.000000e+00> : vector<8xf32>
      %47 = vector.multi_reduction <add>, %46, %cst_44 [1] : vector<8x32xf32> to vector<8xf32>
      %48 = vector.shape_cast %47 : vector<8xf32> to vector<8x1xf32>
      %49 = arith.mulf %33, %arg19 : vector<8x32xf32>
      %cst_45 = arith.constant dense<0.000000e+00> : vector<8xf32>
      %50 = vector.multi_reduction <add>, %49, %cst_45 [1] : vector<8x32xf32> to vector<8xf32>
      %51 = vector.shape_cast %50 : vector<8xf32> to vector<8x1xf32>
      %52 = arith.mulf %35, %arg19 : vector<8x32xf32>
      %cst_46 = arith.constant dense<0.000000e+00> : vector<8xf32>
      %53 = vector.multi_reduction <add>, %52, %cst_46 [1] : vector<8x32xf32> to vector<8xf32>
      %54 = vector.shape_cast %53 : vector<8xf32> to vector<8x1xf32>
      %55 = arith.mulf %37, %arg19 : vector<8x32xf32>
      %cst_47 = arith.constant dense<0.000000e+00> : vector<8xf32>
      %56 = vector.multi_reduction <add>, %55, %cst_47 [1] : vector<8x32xf32> to vector<8xf32>
      %57 = vector.shape_cast %56 : vector<8xf32> to vector<8x1xf32>
      %58 = arith.mulf %39, %arg19 : vector<8x32xf32>
      %cst_48 = arith.constant dense<0.000000e+00> : vector<8xf32>
      %59 = vector.multi_reduction <add>, %58, %cst_48 [1] : vector<8x32xf32> to vector<8xf32>
      %60 = vector.shape_cast %59 : vector<8xf32> to vector<8x1xf32>
      %61 = arith.mulf %41, %arg19 : vector<8x32xf32>
      %cst_49 = arith.constant dense<0.000000e+00> : vector<8xf32>
      %62 = vector.multi_reduction <add>, %61, %cst_49 [1] : vector<8x32xf32> to vector<8xf32>
      %63 = vector.shape_cast %62 : vector<8xf32> to vector<8x1xf32>
      %64 = arith.mulf %43, %arg19 : vector<8x32xf32>
      %cst_50 = arith.constant dense<0.000000e+00> : vector<8xf32>
      %65 = vector.multi_reduction <add>, %64, %cst_50 [1] : vector<8x32xf32> to vector<8xf32>
      %66 = vector.shape_cast %65 : vector<8xf32> to vector<8x1xf32>
      %67 = arith.mulf %45, %arg19 : vector<8x32xf32>
      %cst_51 = arith.constant dense<0.000000e+00> : vector<8xf32>
      %68 = vector.multi_reduction <add>, %67, %cst_51 [1] : vector<8x32xf32> to vector<8xf32>
      %69 = vector.shape_cast %68 : vector<8xf32> to vector<8x1xf32>
      %70 = tpu.concatenate %48, %51, %54, %57, %60, %63, %66, %69 in 1 : vector<8x1xf32>, vector<8x1xf32>, vector<8x1xf32>, vector<8x1xf32>, vector<8x1xf32>, vector<8x1xf32>, vector<8x1xf32>, vector<8x1xf32> -> vector<8x8xf32>
      %cst_52 = arith.constant dense<0xFF800000> : vector<8xf32>
      %71 = vector.multi_reduction <maximumf>, %70, %cst_52 [1] : vector<8x8xf32> to vector<8xf32>
      %72 = vector.shape_cast %71 : vector<8xf32> to vector<8x1xf32>
      %73 = vector.broadcast %72 : vector<8x1xf32> to vector<8x8xf32>
      %74 = arith.subf %70, %73 : vector<8x8xf32>
      %75 = math.exp %74 : vector<8x8xf32>
      %cst_53 = arith.constant dense<0.000000e+00> : vector<8xf32>
      %76 = vector.multi_reduction <add>, %75, %cst_53 [1] : vector<8x8xf32> to vector<8xf32>
      %77 = vector.shape_cast %76 : vector<8xf32> to vector<8x1xf32>
      %78 = tpu.reciprocal %77 {approx = true} : vector<8x1xf32> -> vector<8x1xf32>
      %79 = vector.broadcast %78 : vector<8x1xf32> to vector<8x8xf32>
      %80 = arith.mulf %75, %79 : vector<8x8xf32>
      %81 = vector.extract_strided_slice %80 {offsets = [0, 0], sizes = [8, 1], strides = [1, 1]} : vector<8x8xf32> to vector<8x1xf32>
      %82 = vector.broadcast %81 : vector<8x1xf32> to vector<8x32xf32>
      %83 = arith.mulf %82, %31 : vector<8x32xf32>
      %84 = vector.extract_strided_slice %80 {offsets = [0, 1], sizes = [8, 1], strides = [1, 1]} : vector<8x8xf32> to vector<8x1xf32>
      %85 = vector.broadcast %84 : vector<8x1xf32> to vector<8x32xf32>
      %86 = arith.mulf %85, %33 : vector<8x32xf32>
      %87 = arith.addf %83, %86 : vector<8x32xf32>
      %88 = vector.extract_strided_slice %80 {offsets = [0, 2], sizes = [8, 1], strides = [1, 1]} : vector<8x8xf32> to vector<8x1xf32>
      %89 = vector.broadcast %88 : vector<8x1xf32> to vector<8x32xf32>
      %90 = arith.mulf %89, %35 : vector<8x32xf32>
      %91 = arith.addf %87, %90 : vector<8x32xf32>
      %92 = vector.extract_strided_slice %80 {offsets = [0, 3], sizes = [8, 1], strides = [1, 1]} : vector<8x8xf32> to vector<8x1xf32>
      %93 = vector.broadcast %92 : vector<8x1xf32> to vector<8x32xf32>
      %94 = arith.mulf %93, %37 : vector<8x32xf32>
      %95 = arith.addf %91, %94 : vector<8x32xf32>
      %96 = vector.extract_strided_slice %80 {offsets = [0, 4], sizes = [8, 1], strides = [1, 1]} : vector<8x8xf32> to vector<8x1xf32>
      %97 = vector.broadcast %96 : vector<8x1xf32> to vector<8x32xf32>
      %98 = arith.mulf %97, %39 : vector<8x32xf32>
      %99 = arith.addf %95, %98 : vector<8x32xf32>
      %100 = vector.extract_strided_slice %80 {offsets = [0, 5], sizes = [8, 1], strides = [1, 1]} : vector<8x8xf32> to vector<8x1xf32>
      %101 = vector.broadcast %100 : vector<8x1xf32> to vector<8x32xf32>
      %102 = arith.mulf %101, %41 : vector<8x32xf32>
      %103 = arith.addf %99, %102 : vector<8x32xf32>
      %104 = vector.extract_strided_slice %80 {offsets = [0, 6], sizes = [8, 1], strides = [1, 1]} : vector<8x8xf32> to vector<8x1xf32>
      %105 = vector.broadcast %104 : vector<8x1xf32> to vector<8x32xf32>
      %106 = arith.mulf %105, %43 : vector<8x32xf32>
      %107 = arith.addf %103, %106 : vector<8x32xf32>
      %108 = vector.extract_strided_slice %80 {offsets = [0, 7], sizes = [8, 1], strides = [1, 1]} : vector<8x8xf32> to vector<8x1xf32>
      %109 = vector.broadcast %108 : vector<8x1xf32> to vector<8x32xf32>
      %110 = arith.mulf %109, %45 : vector<8x32xf32>
      %111 = arith.addf %107, %110 : vector<8x32xf32>
      %c0_54 = arith.constant 0 : index
      %c0_55 = arith.constant 0 : index
      %112 = vector.load %arg9[%c0_54, %c0_55] : memref<32x128xf32, #tpu.memory_space<vmem>>, vector<32x128xf32>
      %cst_56 = arith.constant dense<0.000000e+00> : vector<8x128xf32>
      %113 = tpu.matmul %111, %112, %cst_56 {dimension_numbers = #tpu.dot_dimension_numbers<[1], [0], [0], [1], [0, 0, 1, 1], [], []>} : vector<8x32xf32>, vector<32x128xf32>, vector<8x128xf32> -> vector<8x128xf32>
      %114 = arith.addf %25, %113 : vector<8x128xf32>
      %c0_57 = arith.constant 0 : index
      %c0_58 = arith.constant 0 : index
      %115 = vector.load %arg10[%c0_57, %c0_58] : memref<1x128xf32, #tpu.memory_space<vmem>>, vector<1x128xf32>
      %116 = vector.broadcast %115 : vector<1x128xf32> to vector<8x128xf32>
      %117 = arith.addf %114, %116 : vector<8x128xf32>
      %c0_59 = arith.constant 0 : index
      %c0_60 = arith.constant 0 : index
      %118 = vector.load %arg11[%c0_59, %c0_60] : memref<1x32xf32, #tpu.memory_space<vmem>>, vector<1x32xf32>
      %119 = vector.extract_strided_slice %117 {offsets = [0, 0], sizes = [8, 32], strides = [1, 1]} : vector<8x128xf32> to vector<8x32xf32>
      %120 = vector.extract_strided_slice %29 {offsets = [0, 0], sizes = [8, 32], strides = [1, 1]} : vector<8x128xf32> to vector<8x32xf32>
      %121 = arith.addf %119, %120 : vector<8x32xf32>
      %122 = arith.negf %121 : vector<8x32xf32>
      %123 = math.exp %122 : vector<8x32xf32>
      %cst_61 = arith.constant 1.000000e+00 : f32
      %124 = vector.broadcast %cst_61 : f32 to vector<8x32xf32>
      %125 = arith.addf %124, %123 : vector<8x32xf32>
      %126 = arith.divf %124, %125 : vector<8x32xf32>
      %127 = vector.extract_strided_slice %117 {offsets = [0, 32], sizes = [8, 32], strides = [1, 1]} : vector<8x128xf32> to vector<8x32xf32>
      %128 = vector.extract_strided_slice %29 {offsets = [0, 32], sizes = [8, 32], strides = [1, 1]} : vector<8x128xf32> to vector<8x32xf32>
      %129 = arith.addf %127, %128 : vector<8x32xf32>
      %130 = arith.negf %129 : vector<8x32xf32>
      %131 = math.exp %130 : vector<8x32xf32>
      %cst_62 = arith.constant 1.000000e+00 : f32
      %132 = vector.broadcast %cst_62 : f32 to vector<8x32xf32>
      %133 = arith.addf %132, %131 : vector<8x32xf32>
      %134 = arith.divf %132, %133 : vector<8x32xf32>
      %135 = vector.extract_strided_slice %117 {offsets = [0, 64], sizes = [8, 32], strides = [1, 1]} : vector<8x128xf32> to vector<8x32xf32>
      %136 = vector.extract_strided_slice %29 {offsets = [0, 64], sizes = [8, 32], strides = [1, 1]} : vector<8x128xf32> to vector<8x32xf32>
      %137 = vector.broadcast %118 : vector<1x32xf32> to vector<8x32xf32>
      %138 = arith.addf %136, %137 : vector<8x32xf32>
      %139 = arith.mulf %126, %138 : vector<8x32xf32>
      %140 = arith.addf %135, %139 : vector<8x32xf32>
      %141 = math.tanh %140 : vector<8x32xf32>
      %cst_63 = arith.constant 1.000000e+00 : f32
      %142 = vector.broadcast %cst_63 : f32 to vector<8x32xf32>
      %143 = arith.subf %142, %134 : vector<8x32xf32>
      %144 = arith.mulf %143, %141 : vector<8x32xf32>
      %145 = arith.mulf %134, %arg19 : vector<8x32xf32>
      %146 = arith.addf %144, %145 : vector<8x32xf32>
      %c0_64 = arith.constant 0 : index
      %c0_65 = arith.constant 0 : index
      %147 = vector.load %arg12[%c0_64, %c0_65] : memref<32x128xf32, #tpu.memory_space<vmem>>, vector<32x128xf32>
      %cst_66 = arith.constant dense<0.000000e+00> : vector<8x128xf32>
      %148 = tpu.matmul %146, %147, %cst_66 {dimension_numbers = #tpu.dot_dimension_numbers<[1], [0], [0], [1], [0, 0, 1, 1], [], []>} : vector<8x32xf32>, vector<32x128xf32>, vector<8x128xf32> -> vector<8x128xf32>
      %c0_67 = arith.constant 0 : index
      %c0_68 = arith.constant 0 : index
      %149 = vector.load %arg13[%c0_67, %c0_68] : memref<32x128xf32, #tpu.memory_space<vmem>>, vector<32x128xf32>
      %cst_69 = arith.constant dense<0.000000e+00> : vector<8x128xf32>
      %150 = tpu.matmul %111, %149, %cst_69 {dimension_numbers = #tpu.dot_dimension_numbers<[1], [0], [0], [1], [0, 0, 1, 1], [], []>} : vector<8x32xf32>, vector<32x128xf32>, vector<8x128xf32> -> vector<8x128xf32>
      %151 = arith.addf %148, %150 : vector<8x128xf32>
      %152 = arith.addf %151, %27 : vector<8x128xf32>
      %c0_70 = arith.constant 0 : index
      %c0_71 = arith.constant 0 : index
      %153 = vector.load %arg14[%c0_70, %c0_71] : memref<1x128xf32, #tpu.memory_space<vmem>>, vector<1x128xf32>
      %154 = vector.broadcast %153 : vector<1x128xf32> to vector<8x128xf32>
      %155 = arith.addf %152, %154 : vector<8x128xf32>
      %156 = arith.index_cast %arg18 : i32 to index
      %c0_72 = arith.constant 0 : index
      %c0_73 = arith.constant 0 : index
      %157 = vector.load %arg15[%156, %c0_72, %c0_73] : memref<8x8x128xf32, #tpu.memory_space<vmem>>, vector<1x8x128xf32>
      %158 = vector.shape_cast %157 : vector<1x8x128xf32> to vector<8x128xf32>
      %159 = vector.shape_cast %155 : vector<8x128xf32> to vector<1x8x128xf32>
      tpu.vector_store %arg15[%156, %c0_72, %c0_73], %159 {strides = array<i32>} : memref<8x8x128xf32, #tpu.memory_space<vmem>>, vector<1x8x128xf32>,
      %cst_74 = arith.constant -1.000000e+30 : f32
      %160 = vector.broadcast %cst_74 : f32 to vector<8x128xf32>
      %161 = arith.select %16, %155, %160 : vector<8x128xi1>, vector<8x128xf32>
      %cst_75 = arith.constant dense<0xFF800000> : vector<8xf32>
      %162 = vector.multi_reduction <maximumf>, %161, %cst_75 [1] : vector<8x128xf32> to vector<8xf32>
      %163 = vector.shape_cast %162 : vector<8xf32> to vector<8x1xf32>
      %164 = vector.broadcast %163 : vector<8x1xf32> to vector<8x128xf32>
      %165 = arith.cmpf oeq, %161, %164 : vector<8x128xf32>
      %c128_i32 = arith.constant 128 : i32
      %166 = vector.broadcast %c128_i32 : i32 to vector<8x128xi32>
      %167 = arith.select %165, %14, %166 : vector<8x128xi1>, vector<8x128xi32>
      %cst_76 = arith.constant dense<2147483647> : vector<8xi32>
      %168 = vector.multi_reduction <minsi>, %167, %cst_76 [1] : vector<8x128xi32> to vector<8xi32>
      %169 = vector.shape_cast %168 : vector<8xi32> to vector<8x1xi32>
      %170 = vector.broadcast %169 : vector<8x1xi32> to vector<8x128xi32>
      %171 = arith.cmpi eq, %14, %170 : vector<8x128xi32>
      %172 = arith.extui %171 : vector<8x128xi1> to vector<8x128xi32>
      %173 = arith.sitofp %172 : vector<8x128xi32> to vector<8x128xf32>
      scf.yield %146, %173 : vector<8x32xf32>, vector<8x128xf32>
    }
    %c7_i32_17 = arith.constant 7 : i32
    return
  }
}

</mosaic_0001>

<llo_original>
// kernel: seq2seq_forward.1
$region0: #{seq2seq_forward.1}
  #allocation0 [shape = 'u32[]', space=smem, size = 0x4, offset = 0x4, fixed_abs, tag = 'smem constant byte address 0x4 - core index']
  #allocation1 [shape = 'u32[144,128]{1,0:T(1,128)}', space=vmem, size = 0x12000, scoped, tag = 'internal scratch']
  #allocation2 [shape = 'f32[8,8,32]{2,1,0:T(8,128)}', space=vmem, size = 0x8000, scoped, tag = 'scratch operand']
  #allocation3 [shape = 'f32[64,128]{1,0:T(8,128)}', space=vmem, size = 0x8000, scoped, tag = 'scratch operand']
  %s0 = inlined_call_operand.vmem [shape: f32[64,32], index: 0, kind: input, shape index: {}]
  %s1 = inlined_call_operand.vmem [shape: s32[8,1], index: 1, kind: input, shape index: {}]
  %s2 = inlined_call_operand.vmem [shape: f32[32,128], index: 2, kind: input, shape index: {}]
  %s3 = inlined_call_operand.vmem [shape: f32[1,128], index: 3, kind: input, shape index: {}]
  %s4 = inlined_call_operand.vmem [shape: f32[32,128], index: 4, kind: input, shape index: {}]
  %s5 = inlined_call_operand.vmem [shape: f32[1,32], index: 5, kind: input, shape index: {}]
  %s6 = inlined_call_operand.vmem [shape: f32[128,128], index: 6, kind: input, shape index: {}]
  %s7 = inlined_call_operand.vmem [shape: f32[128,128], index: 7, kind: input, shape index: {}]
  %s8 = inlined_call_operand.vmem [shape: f32[32,128], index: 8, kind: input, shape index: {}]
  %s9 = inlined_call_operand.vmem [shape: f32[32,128], index: 9, kind: input, shape index: {}]
  %s10 = inlined_call_operand.vmem [shape: f32[1,128], index: 10, kind: input, shape index: {}]
  %s11 = inlined_call_operand.vmem [shape: f32[1,32], index: 11, kind: input, shape index: {}]
  %s12 = inlined_call_operand.vmem [shape: f32[32,128], index: 12, kind: input, shape index: {}]
  %s13 = inlined_call_operand.vmem [shape: f32[32,128], index: 13, kind: input, shape index: {}]
  %s14 = inlined_call_operand.vmem [shape: f32[1,128], index: 14, kind: input, shape index: {}]
  %s15 = inlined_call_operand.hbm [shape: f32[8,8,128], index: 15, kind: output, shape index: {}]
  %s16 = sld [smem:[#allocation0]]
  $region84: #{seq2seq_forward.1} parent=0
    _
  %s18 = ssub.s32 1, %s16
  %s19 = scalar_select 0, %s18, %s16
  $region1: #{seq2seq_forward.1} parent=0
    #allocation4 [shape = 'u8[32768]{0}', space=vmem, size = 0x8000, scoped, tag = 'output window, operand 0, single buffered']
    #allocation5 [shape = 's32[1]{0}', space=sflag, size = 0x4, scoped, tag = 'scoped memory for seq2seq_forward.1']
    %20 = vsyncpa [#allocation5], 0
    // Predicated region
    $region2: #{seq2seq_forward.1} parent=1 // pred_check
      _
    $region3: #{seq2seq_forward.1} parent=1 // pred_check_branch
      %22 = sbr.rel (0) target = $region5
    $region4: #{seq2seq_forward.1} parent=1 // pred_region
      _
    $region5: #{seq2seq_forward.1} parent=1 // pred_fallthru
      _
    // Predicated region
    $region6: #{seq2seq_forward.1} parent=1 // pred_check
      _
    $region7: #{seq2seq_forward.1} parent=1 // pred_check_branch
      %24 = sbr.rel (0) target = $region9
    $region8: #{seq2seq_forward.1} parent=1 // pred_region
      _
    $region9: #{seq2seq_forward.1} parent=1 // pred_fallthru
      _
    // Predicated region
    $region10: #{seq2seq_forward.1} parent=1 // pred_check
      _
    $region11: #{seq2seq_forward.1} parent=1 // pred_check_branch
      %26 = sbr.rel (0) target = $region13
    $region12: #{seq2seq_forward.1} parent=1 // pred_region
      _
    $region13: #{seq2seq_forward.1} parent=1 // pred_fallthru
      _
    // Predicated region
    $region14: #{seq2seq_forward.1} parent=1 // pred_check
      _
    $region15: #{seq2seq_forward.1} parent=1 // pred_check_branch
      %28 = sbr.rel (0) target = $region17
    $region16: #{seq2seq_forward.1} parent=1 // pred_region
      _
    $region17: #{seq2seq_forward.1} parent=1 // pred_fallthru
      _
    // Predicated region
    $region18: #{seq2seq_forward.1} parent=1 // pred_check
      _
    $region19: #{seq2seq_forward.1} parent=1 // pred_check_branch
      %30 = sbr.rel (0) target = $region21
    $region20: #{seq2seq_forward.1} parent=1 // pred_region
      _
    $region21: #{seq2seq_forward.1} parent=1 // pred_fallthru
      _
    // Predicated region
    $region22: #{seq2seq_forward.1} parent=1 // pred_check
      _
    $region23: #{seq2seq_forward.1} parent=1 // pred_check_branch
      %32 = sbr.rel (0) target = $region25
    $region24: #{seq2seq_forward.1} parent=1 // pred_region
      _
    $region25: #{seq2seq_forward.1} parent=1 // pred_fallthru
      _
    // Predicated region
    $region26: #{seq2seq_forward.1} parent=1 // pred_check
      _
    $region27: #{seq2seq_forward.1} parent=1 // pred_check_branch
      %34 = sbr.rel (0) target = $region29
    $region28: #{seq2seq_forward.1} parent=1 // pred_region
      _
    $region29: #{seq2seq_forward.1} parent=1 // pred_fallthru
      _
    // Predicated region
    $region30: #{seq2seq_forward.1} parent=1 // pred_check
      _
    $region31: #{seq2seq_forward.1} parent=1 // pred_check_branch
      %36 = sbr.rel (0) target = $region33
    $region32: #{seq2seq_forward.1} parent=1 // pred_region
      _
    $region33: #{seq2seq_forward.1} parent=1 // pred_fallthru
      _
    // Predicated region
    $region34: #{seq2seq_forward.1} parent=1 // pred_check
      _
    $region35: #{seq2seq_forward.1} parent=1 // pred_check_branch
      %38 = sbr.rel (0) target = $region37
    $region36: #{seq2seq_forward.1} parent=1 // pred_region
      _
    $region37: #{seq2seq_forward.1} parent=1 // pred_fallthru
      _
    // Predicated region
    $region38: #{seq2seq_forward.1} parent=1 // pred_check
      _
    $region39: #{seq2seq_forward.1} parent=1 // pred_check_branch
      %40 = sbr.rel (0) target = $region41
    $region40: #{seq2seq_forward.1} parent=1 // pred_region
      _
    $region41: #{seq2seq_forward.1} parent=1 // pred_fallthru
      _
    // Predicated region
    $region42: #{seq2seq_forward.1} parent=1 // pred_check
      _
    $region43: #{seq2seq_forward.1} parent=1 // pred_check_branch
      %42 = sbr.rel (0) target = $region45
    $region44: #{seq2seq_forward.1} parent=1 // pred_region
      _
    $region45: #{seq2seq_forward.1} parent=1 // pred_fallthru
      _
    // Predicated region
    $region46: #{seq2seq_forward.1} parent=1 // pred_check
      _
    $region47: #{seq2seq_forward.1} parent=1 // pred_check_branch
      %44 = sbr.rel (0) target = $region49
    $region48: #{seq2seq_forward.1} parent=1 // pred_region
      _
    $region49: #{seq2seq_forward.1} parent=1 // pred_fallthru
      _
    // Predicated region
    $region50: #{seq2seq_forward.1} parent=1 // pred_check
      _
    $region51: #{seq2seq_forward.1} parent=1 // pred_check_branch
      %46 = sbr.rel (0) target = $region53
    $region52: #{seq2seq_forward.1} parent=1 // pred_region
      _
    $region53: #{seq2seq_forward.1} parent=1 // pred_fallthru
      _
    // Predicated region
    $region54: #{seq2seq_forward.1} parent=1 // pred_check
      _
    $region55: #{seq2seq_forward.1} parent=1 // pred_check_branch
      %48 = sbr.rel (0) target = $region57
    $region56: #{seq2seq_forward.1} parent=1 // pred_region
      _
    $region57: #{seq2seq_forward.1} parent=1 // pred_fallthru
      _
    // Predicated region
    $region58: #{seq2seq_forward.1} parent=1 // pred_check
      _
    $region59: #{seq2seq_forward.1} parent=1 // pred_check_branch
      %50 = sbr.rel (0) target = $region61
    $region60: #{seq2seq_forward.1} parent=1 // pred_region
      _
    $region61: #{seq2seq_forward.1} parent=1 // pred_fallthru
      _
    %v51 = vld [vmem:[%s0] sm:$0xff]
    %v52 = vld [vmem:[%s0 + $0x8] sm:$0xff]
    %v53 = vld [vmem:[%s0 + $0x10] sm:$0xff]
    %v54 = vld [vmem:[%s0 + $0x18] sm:$0xff]
    %v55 = vld [vmem:[%s0 + $0x20] sm:$0xff]
    %v56 = vld [vmem:[%s0 + $0x28] sm:$0xff]
    %v57 = vld [vmem:[%s0 + $0x30] sm:$0xff]
    %v58 = vld [vmem:[%s0 + $0x38] sm:$0xff]
    %v59 = vld [vmem:[%s2] sm:$0xff]
    %v60 = vld [vmem:[%s2 + $0x8] sm:$0xff]
    %v61 = vld [vmem:[%s2 + $0x10] sm:$0xff]
    %v62 = vld [vmem:[%s2 + $0x18] sm:$0xff]
    %v63 = vld [vmem:[%s3] sm:$0x1]
    %v65 = vlaneseq
    %v66 = vshrl.u32 %v65, 7
    %v67 = vsub.s32 0, %v66
    %v68 = vrot.slane %v63, %v67
    %vm70 = vcmask 261120
    %v72 = vsel %vm70, %v51, 0
    %v75 = vsel %vm70, %v52, 0
    %v78 = vsel %vm70, %v53, 0
    %v81 = vsel %vm70, %v54, 0
    %v84 = vsel %vm70, %v55, 0
    %v87 = vsel %vm70, %v56, 0
    %v90 = vsel %vm70, %v57, 0
    %v93 = vsel %vm70, %v58, 0
    %95 = vmatprep.subr.mxu0 0.0
    %96 = vmatpush1.msra.mxu0 0.0
    %97 = vmatprep.subr.mxu0 0.0
    %98 = vmatpush1.msra.mxu0 0.0
    %99 = vmatprep.subr.mxu0 0.0
    %100 = vmatpush1.msra.mxu0 0.0
    %101 = vmatprep.subr.mxu0 0.0
    %102 = vmatpush1.msra.mxu0 0.0
    %103 = vmatprep.subr.mxu0 0.0
    %104 = vmatpush1.msra.mxu0 0.0
    %105 = vmatprep.subr.mxu0 0.0
    %106 = vmatpush1.msra.mxu0 0.0
    %107 = vmatprep.subr.mxu0 0.0
    %108 = vmatpush1.msra.mxu0 0.0
    %109 = vmatprep.subr.mxu0 0.0
    %110 = vmatpush1.msra.mxu0 0.0
    %111 = vmatprep.subr.mxu0 0.0
    %112 = vmatpush1.msra.mxu0 0.0
    %113 = vmatprep.subr.mxu0 0.0
    %114 = vmatpush1.msra.mxu0 0.0
    %115 = vmatprep.subr.mxu0 0.0
    %116 = vmatpush1.msra.mxu0 0.0
    %117 = vmatprep.subr.mxu0 0.0
    %118 = vmatpush1.msra.mxu0 0.0
    %119 = vmatprep.subr.mxu0 0.0
    %120 = vmatpush1.msra.mxu0 %v62
    %121 = vmatprep.subr.mxu0 0.0
    %122 = vmatpush1.msra.mxu0 %v61
    %123 = vmatprep.subr.mxu0 0.0
    %124 = vmatpush1.msra.mxu0 %v60
    %125 = vmatprep.subr.mxu0 0.0
    %126 = vmatpush1.msra.mxu0 %v59
    %127 = vmatprep.subr.mxu0 0.0
    %128 = vmatpush2.msra.mxu0 0.0
    %129 = vmatprep.subr.mxu0 0.0
    %130 = vmatpush2.msra.mxu0 0.0
    %131 = vmatprep.subr.mxu0 0.0
    %132 = vmatpush2.msra.mxu0 0.0
    %133 = vmatprep.subr.mxu0 0.0
    %134 = vmatpush2.msra.mxu0 0.0
    %135 = vmatprep.subr.mxu0 0.0
    %136 = vmatpush2.msra.mxu0 0.0
    %137 = vmatprep.subr.mxu0 0.0
    %138 = vmatpush2.msra.mxu0 0.0
    %139 = vmatprep.subr.mxu0 0.0
    %140 = vmatpush2.msra.mxu0 0.0
    %141 = vmatprep.subr.mxu0 0.0
    %142 = vmatpush2.msra.mxu0 0.0
    %143 = vmatprep.subr.mxu0 0.0
    %144 = vmatpush2.msra.mxu0 0.0
    %145 = vmatprep.subr.mxu0 0.0
    %146 = vmatpush2.msra.mxu0 0.0
    %147 = vmatprep.subr.mxu0 0.0
    %148 = vmatpush2.msra.mxu0 0.0
    %149 = vmatprep.subr.mxu0 0.0
    %150 = vmatpush2.msra.mxu0 0.0
    %151 = vmatprep.subr.mxu0 0.0
    %152 = vmatpush2.msra.mxu0 0.0
    %153 = vmatprep.subr.mxu0 0.0
    %154 = vmatpush2.msra.mxu0 0.0
    %155 = vmatprep.subr.mxu0 0.0
    %156 = vmatpush2.msra.mxu0 0.0
    %157 = vmatprep.subr.mxu0 0.0
    %158 = vmatpush2.msra.mxu0 0.0
    %159 = vmatprep.mubr.f32.mxu0 0.0
    %160 = vmatmul.mubr.f32.gmra.mxu0 %v72
    %v161 = vpop.f32.mrf.mxu0
    %v162 = vadd.f32 %v68, %v161
    %v163 = vpop.f32.mrf.mxu0
    %164 = vmatprep.mubr.f32.mxu0 0.0
    %165 = vmatmul.mubr.f32.gmra.mxu0 %v75
    %v166 = vpop.f32.mrf.mxu0
    %v167 = vadd.f32 %v68, %v166
    %v168 = vpop.f32.mrf.mxu0
    %169 = vmatprep.mubr.f32.mxu0 0.0
    %170 = vmatmul.mubr.f32.gmra.mxu0 %v78
    %v171 = vpop.f32.mrf.mxu0
    %v172 = vadd.f32 %v68, %v171
    %v173 = vpop.f32.mrf.mxu0
    %174 = vmatprep.mubr.f32.mxu0 0.0
    %175 = vmatmul.mubr.f32.gmra.mxu0 %v81
    %v176 = vpop.f32.mrf.mxu0
    %v177 = vadd.f32 %v68, %v176
    %v178 = vpop.f32.mrf.mxu0
    %179 = vmatprep.mubr.f32.mxu0 0.0
    %180 = vmatmul.mubr.f32.gmra.mxu0 %v84
    %v181 = vpop.f32.mrf.mxu0
    %v182 = vadd.f32 %v68, %v181
    %v183 = vpop.f32.mrf.mxu0
    %184 = vmatprep.mubr.f32.mxu0 0.0
    %185 = vmatmul.mubr.f32.gmra.mxu0 %v87
    %v186 = vpop.f32.mrf.mxu0
    %v187 = vadd.f32 %v68, %v186
    %v188 = vpop.f32.mrf.mxu0
    %189 = vmatprep.mubr.f32.mxu0 0.0
    %190 = vmatmul.mubr.f32.gmra.mxu0 %v90
    %v191 = vpop.f32.mrf.mxu0
    %v192 = vadd.f32 %v68, %v191
    %v193 = vpop.f32.mrf.mxu0
    %194 = vmatprep.mubr.f32.mxu0 0.0
    %195 = vmatmul.mubr.f32.gmra.mxu0 %v93
    %v196 = vpop.f32.mrf.mxu0
    %v197 = vadd.f32 %v68, %v196
    %v198 = vpop.f32.mrf.mxu0
    %199 = vdwg.mxu0
    %200 = vst [vmem:[#allocation3] sm:$0xff] %v162
    %201 = vst [vmem:[#allocation3 + $0x8] sm:$0xff] %v167
    %202 = vst [vmem:[#allocation3 + $0x10] sm:$0xff] %v172
    %203 = vst [vmem:[#allocation3 + $0x18] sm:$0xff] %v177
    %204 = vst [vmem:[#allocation3 + $0x20] sm:$0xff] %v182
    %205 = vst [vmem:[#allocation3 + $0x28] sm:$0xff] %v187
    %206 = vst [vmem:[#allocation3 + $0x30] sm:$0xff] %v192
    %207 = vst [vmem:[#allocation3 + $0x38] sm:$0xff] %v197
    loop: start=0, step=1, limit=8
    $region62: #{seq2seq_forward.1} parent=1 // loop_pre_header
      _
    $region63: #{seq2seq_forward.1} parent=1 // loop_header
      %s209 = sphi 0, %s213
      %p210 = scmp.ge.s32.totalorder %s209, 8
      %v214 = vphi 0.0, %v332
    $region64: #{seq2seq_forward.1} parent=1 // loop_header_branch
      %212 = sbr.rel (%p210) target = $region68
    $region65: #{seq2seq_forward.1} parent=1 // loop_body
      %s215 = smul.u32 %s209, 8
      %s216 = scalar_lea.vmem [#allocation3], %s215
      %v217 = vld [vmem:[%s216] sm:$0xff]
      %v218 = vld [vmem:[%s4] sm:$0xff]
      %v219 = vld [vmem:[%s4 + $0x8] sm:$0xff]
      %v220 = vld [vmem:[%s4 + $0x10] sm:$0xff]
      %v221 = vld [vmem:[%s4 + $0x18] sm:$0xff]
      %223 = vrot.lane.b32.xlu0 %v214, 96
      %v224 = vpop.permute.xlu0 %223
      %v225 = vsel %vm70, %v224, 0
      %227 = vmatprep.subr.mxu0 0.0
      %228 = vmatpush1.msra.mxu0 0.0
      %229 = vmatprep.subr.mxu0 0.0
      %230 = vmatpush1.msra.mxu0 0.0
      %231 = vmatprep.subr.mxu0 0.0
      %232 = vmatpush1.msra.mxu0 0.0
      %233 = vmatprep.subr.mxu0 0.0
      %234 = vmatpush1.msra.mxu0 0.0
      %235 = vmatprep.subr.mxu0 0.0
      %236 = vmatpush1.msra.mxu0 0.0
      %237 = vmatprep.subr.mxu0 0.0
      %238 = vmatpush1.msra.mxu0 0.0
      %239 = vmatprep.subr.mxu0 0.0
      %240 = vmatpush1.msra.mxu0 0.0
      %241 = vmatprep.subr.mxu0 0.0
      %242 = vmatpush1.msra.mxu0 0.0
      %243 = vmatprep.subr.mxu0 0.0
      %244 = vmatpush1.msra.mxu0 0.0
      %245 = vmatprep.subr.mxu0 0.0
      %246 = vmatpush1.msra.mxu0 0.0
      %247 = vmatprep.subr.mxu0 0.0
      %248 = vmatpush1.msra.mxu0 0.0
      %249 = vmatprep.subr.mxu0 0.0
      %250 = vmatpush1.msra.mxu0 0.0
      %251 = vmatprep.subr.mxu0 0.0
      %252 = vmatpush1.msra.mxu0 %v221
      %253 = vmatprep.subr.mxu0 0.0
      %254 = vmatpush1.msra.mxu0 %v220
      %255 = vmatprep.subr.mxu0 0.0
      %256 = vmatpush1.msra.mxu0 %v219
      %257 = vmatprep.subr.mxu0 0.0
      %258 = vmatpush1.msra.mxu0 %v218
      %259 = vmatprep.subr.mxu0 0.0
      %260 = vmatpush2.msra.mxu0 0.0
      %261 = vmatprep.subr.mxu0 0.0
      %262 = vmatpush2.msra.mxu0 0.0
      %263 = vmatprep.subr.mxu0 0.0
      %264 = vmatpush2.msra.mxu0 0.0
      %265 = vmatprep.subr.mxu0 0.0
      %266 = vmatpush2.msra.mxu0 0.0
      %267 = vmatprep.subr.mxu0 0.0
      %268 = vmatpush2.msra.mxu0 0.0
      %269 = vmatprep.subr.mxu0 0.0
      %270 = vmatpush2.msra.mxu0 0.0
      %271 = vmatprep.subr.mxu0 0.0
      %272 = vmatpush2.msra.mxu0 0.0
      %273 = vmatprep.subr.mxu0 0.0
      %274 = vmatpush2.msra.mxu0 0.0
      %275 = vmatprep.subr.mxu0 0.0
      %276 = vmatpush2.msra.mxu0 0.0
      %277 = vmatprep.subr.mxu0 0.0
      %278 = vmatpush2.msra.mxu0 0.0
      %279 = vmatprep.subr.mxu0 0.0
      %280 = vmatpush2.msra.mxu0 0.0
      %281 = vmatprep.subr.mxu0 0.0
      %282 = vmatpush2.msra.mxu0 0.0
      %283 = vmatprep.subr.mxu0 0.0
      %284 = vmatpush2.msra.mxu0 0.0
      %285 = vmatprep.subr.mxu0 0.0
      %286 = vmatpush2.msra.mxu0 0.0
      %287 = vmatprep.subr.mxu0 0.0
      %288 = vmatpush2.msra.mxu0 0.0
      %289 = vmatprep.subr.mxu0 0.0
      %290 = vmatpush2.msra.mxu0 0.0
      %291 = vmatprep.mubr.f32.mxu0 0.0
      %292 = vmatmul.mubr.f32.gmra.mxu0 %v225
      %v293 = vpop.f32.mrf.mxu0
      %v294 = vadd.f32 0.0, %v293
      %v295 = vpop.f32.mrf.mxu0
      %296 = vdwg.mxu0
      %v297 = vld [vmem:[%s5] sm:$0x1]
      %v298 = vadd.f32 %v217, %v294
      %v299 = vxor.u32 %v298, 2147483648
      %v300 = vmul.f32 %v299, 1.442695
      %v301 = vpow.pop %v300
      %v302 = vadd.f32 %v301, 1.0
      %v303 = vrcp.pop %v302
      %v304 = vmul.f32 1.0, %v303
      %v306 = vlaneseq
      %v307 = vshrl.u32 %v306, 7
      %v308 = vsub.s32 0, %v307
      %v309 = vrot.slane %v297, %v308
      %310 = vrot.lane.b32.xlu0 %v309, 64
      %v311 = vpop.permute.xlu0 %310
      %v313 = vadd.f32 %v294, %v311
      %315 = vrot.lane.b32.xlu0 %v313, 64
      %v316 = vpop.permute.xlu0 %315
      %v318 = vmul.f32 %v304, %v316
      %320 = vrot.lane.b32.xlu0 %v318, 64
      %v321 = vpop.permute.xlu0 %320
      %v323 = vadd.f32 %v217, %v321
      %v324 = vtanh.pop %v323
      %v325 = vsub.f32 1.0, %v304
      %327 = vrot.lane.b32.xlu0 %v324, 96
      %v328 = vpop.permute.xlu0 %327
      %v330 = vmul.f32 %v325, %v328
      %v331 = vmul.f32 %v304, %v214
      %v332 = vadd.f32 %v330, %v331
      %334 = vrot.lane.b32.xlu0 %v332, 96
      %v335 = vpop.permute.xlu0 %334
      %s337 = scalar_lea.vmem [#allocation2], %s215
      %338 = vst.msk [vmem:[%s337] sm:$0xff] %vm70, %v335
    $region66: #{seq2seq_forward.1} parent=1 // loop_footer
      %s213 = sadd.s32 1, %s209
    $region67: #{seq2seq_forward.1} parent=1 // loop_footer_branch
      %208 = sbr.rel target = $region63
    $region68: #{seq2seq_forward.1} parent=1 // loop_exit
      _
    %339 = vst [vmem:[#allocation4] sm:$0xff] 0.0
    %v340 = vlaneseq
    %v341 = vand.u32 %v340, 127
    %vm342 = vcmp.lt.s32.totalorder %v341, 16
    %v343 = vld [vmem:[%s1] sm:$0xff]
    %344 = vset.pattern.permute.xlu0 0
    %345 = vperm.xlu0 %344, %v343
    %v346 = vpop.permute.xlu0 %345
    %vm347 = vcmp.eq.s32.totalorder %v346, %v341
    %v348 = vsel %vm347, 1, 0
    %v349 = vcvt.s32.f32 %v348
    loop: start=1, step=1, limit=8
    $region69: #{seq2seq_forward.1} parent=1 // loop_pre_header
      _
    $region70: #{seq2seq_forward.1} parent=1 // loop_header
      %s351 = sphi 1, %s355
      %p352 = scmp.ge.s32.totalorder %s351, 8
      %v356 = vphi %v214, %v851
      %v357 = vphi %v349, %v1038
    $region71: #{seq2seq_forward.1} parent=1 // loop_header_branch
      %354 = sbr.rel (%p352) target = $region75
    $region72: #{seq2seq_forward.1} parent=1 // loop_body
      %v358 = vld [vmem:[%s6] sm:$0xff]
      %v359 = vld [vmem:[%s6 + $0x8] sm:$0xff]
      %v360 = vld [vmem:[%s6 + $0x10] sm:$0xff]
      %v361 = vld [vmem:[%s6 + $0x18] sm:$0xff]
      %v362 = vld [vmem:[%s6 + $0x20] sm:$0xff]
      %v363 = vld [vmem:[%s6 + $0x28] sm:$0xff]
      %v364 = vld [vmem:[%s6 + $0x30] sm:$0xff]
      %v365 = vld [vmem:[%s6 + $0x38] sm:$0xff]
      %v366 = vld [vmem:[%s6 + $0x40] sm:$0xff]
      %v367 = vld [vmem:[%s6 + $0x48] sm:$0xff]
      %v368 = vld [vmem:[%s6 + $0x50] sm:$0xff]
      %v369 = vld [vmem:[%s6 + $0x58] sm:$0xff]
      %v370 = vld [vmem:[%s6 + $0x60] sm:$0xff]
      %v371 = vld [vmem:[%s6 + $0x68] sm:$0xff]
      %v372 = vld [vmem:[%s6 + $0x70] sm:$0xff]
      %v373 = vld [vmem:[%s6 + $0x78] sm:$0xff]
      %v374 = vld [vmem:[%s7] sm:$0xff]
      %v375 = vld [vmem:[%s7 + $0x8] sm:$0xff]
      %v376 = vld [vmem:[%s7 + $0x10] sm:$0xff]
      %v377 = vld [vmem:[%s7 + $0x18] sm:$0xff]
      %v378 = vld [vmem:[%s7 + $0x20] sm:$0xff]
      %v379 = vld [vmem:[%s7 + $0x28] sm:$0xff]
      %v380 = vld [vmem:[%s7 + $0x30] sm:$0xff]
      %v381 = vld [vmem:[%s7 + $0x38] sm:$0xff]
      %v382 = vld [vmem:[%s7 + $0x40] sm:$0xff]
      %v383 = vld [vmem:[%s7 + $0x48] sm:$0xff]
      %v384 = vld [vmem:[%s7 + $0x50] sm:$0xff]
      %v385 = vld [vmem:[%s7 + $0x58] sm:$0xff]
      %v386 = vld [vmem:[%s7 + $0x60] sm:$0xff]
      %v387 = vld [vmem:[%s7 + $0x68] sm:$0xff]
      %v388 = vld [vmem:[%s7 + $0x70] sm:$0xff]
      %v389 = vld [vmem:[%s7 + $0x78] sm:$0xff]
      %390 = vmatprep.subr.mxu0 0.0
      %391 = vmatpush1.msra.mxu0 %v389
      %392 = vmatprep.subr.mxu0 0.0
      %393 = vmatpush1.msra.mxu0 %v388
      %394 = vmatprep.subr.mxu0 0.0
      %395 = vmatpush1.msra.mxu0 %v387
      %396 = vmatprep.subr.mxu0 0.0
      %397 = vmatpush1.msra.mxu0 %v386
      %398 = vmatprep.subr.mxu0 0.0
      %399 = vmatpush1.msra.mxu0 %v385
      %400 = vmatprep.subr.mxu0 0.0
      %401 = vmatpush1.msra.mxu0 %v384
      %402 = vmatprep.subr.mxu0 0.0
      %403 = vmatpush1.msra.mxu0 %v383
      %404 = vmatprep.subr.mxu0 0.0
      %405 = vmatpush1.msra.mxu0 %v382
      %406 = vmatprep.subr.mxu0 0.0
      %407 = vmatpush1.msra.mxu0 %v381
      %408 = vmatprep.subr.mxu0 0.0
      %409 = vmatpush1.msra.mxu0 %v380
      %410 = vmatprep.subr.mxu0 0.0
      %411 = vmatpush1.msra.mxu0 %v379
      %412 = vmatprep.subr.mxu0 0.0
      %413 = vmatpush1.msra.mxu0 %v378
      %414 = vmatprep.subr.mxu0 0.0
      %415 = vmatpush1.msra.mxu0 %v377
      %416 = vmatprep.subr.mxu0 0.0
      %417 = vmatpush1.msra.mxu0 %v376
      %418 = vmatprep.subr.mxu0 0.0
      %419 = vmatpush1.msra.mxu0 %v375
      %420 = vmatprep.subr.mxu0 0.0
      %421 = vmatpush1.msra.mxu0 %v374
      %422 = vmatprep.subr.mxu0 0.0
      %423 = vmatpush2.msra.mxu0 0.0
      %424 = vmatprep.subr.mxu0 0.0
      %425 = vmatpush2.msra.mxu0 0.0
      %426 = vmatprep.subr.mxu0 0.0
      %427 = vmatpush2.msra.mxu0 0.0
      %428 = vmatprep.subr.mxu0 0.0
      %429 = vmatpush2.msra.mxu0 0.0
      %430 = vmatprep.subr.mxu0 0.0
      %431 = vmatpush2.msra.mxu0 0.0
      %432 = vmatprep.subr.mxu0 0.0
      %433 = vmatpush2.msra.mxu0 0.0
      %434 = vmatprep.subr.mxu0 0.0
      %435 = vmatpush2.msra.mxu0 0.0
      %436 = vmatprep.subr.mxu0 0.0
      %437 = vmatpush2.msra.mxu0 0.0
      %438 = vmatprep.subr.mxu0 0.0
      %439 = vmatpush2.msra.mxu0 0.0
      %440 = vmatprep.subr.mxu0 0.0
      %441 = vmatpush2.msra.mxu0 0.0
      %442 = vmatprep.subr.mxu0 0.0
      %443 = vmatpush2.msra.mxu0 0.0
      %444 = vmatprep.subr.mxu0 0.0
      %445 = vmatpush2.msra.mxu0 0.0
      %446 = vmatprep.subr.mxu0 0.0
      %447 = vmatpush2.msra.mxu0 0.0
      %448 = vmatprep.subr.mxu0 0.0
      %449 = vmatpush2.msra.mxu0 0.0
      %450 = vmatprep.subr.mxu0 0.0
      %451 = vmatpush2.msra.mxu0 0.0
      %452 = vmatprep.subr.mxu0 0.0
      %453 = vmatpush2.msra.mxu0 0.0
      %454 = vmatprep.mubr.f32.mxu0 0.0
      %455 = vmatmul.mubr.f32.gmra.mxu0 %v357
      %v456 = vpop.f32.mrf.mxu0
      %v457 = vadd.f32 0.0, %v456
      %v458 = vpop.f32.mrf.mxu0
      %459 = vdwg.mxu0
      %v460 = vld [vmem:[%s8] sm:$0xff]
      %v461 = vld [vmem:[%s8 + $0x8] sm:$0xff]
      %v462 = vld [vmem:[%s8 + $0x10] sm:$0xff]
      %v463 = vld [vmem:[%s8 + $0x18] sm:$0xff]
      %465 = vrot.lane.b32.xlu0 %v356, 96
      %v466 = vpop.permute.xlu0 %465
      %v467 = vsel %vm70, %v466, 0
      %469 = vmatprep.subr.mxu0 0.0
      %470 = vmatpush1.msra.mxu0 0.0
      %471 = vmatprep.subr.mxu0 0.0
      %472 = vmatpush1.msra.mxu0 0.0
      %473 = vmatprep.subr.mxu0 0.0
      %474 = vmatpush1.msra.mxu0 0.0
      %475 = vmatprep.subr.mxu0 0.0
      %476 = vmatpush1.msra.mxu0 0.0
      %477 = vmatprep.subr.mxu0 0.0
      %478 = vmatpush1.msra.mxu0 0.0
      %479 = vmatprep.subr.mxu0 0.0
      %480 = vmatpush1.msra.mxu0 0.0
      %481 = vmatprep.subr.mxu0 0.0
      %482 = vmatpush1.msra.mxu0 0.0
      %483 = vmatprep.subr.mxu0 0.0
      %484 = vmatpush1.msra.mxu0 0.0
      %485 = vmatprep.subr.mxu0 0.0
      %486 = vmatpush1.msra.mxu0 0.0
      %487 = vmatprep.subr.mxu0 0.0
      %488 = vmatpush1.msra.mxu0 0.0
      %489 = vmatprep.subr.mxu0 0.0
      %490 = vmatpush1.msra.mxu0 0.0
      %491 = vmatprep.subr.mxu0 0.0
      %492 = vmatpush1.msra.mxu0 0.0
      %493 = vmatprep.subr.mxu0 0.0
      %494 = vmatpush1.msra.mxu0 %v463
      %495 = vmatprep.subr.mxu0 0.0
      %496 = vmatpush1.msra.mxu0 %v462
      %497 = vmatprep.subr.mxu0 0.0
      %498 = vmatpush1.msra.mxu0 %v461
      %499 = vmatprep.subr.mxu0 0.0
      %500 = vmatpush1.msra.mxu0 %v460
      %501 = vmatprep.subr.mxu0 0.0
      %502 = vmatpush2.msra.mxu0 0.0
      %503 = vmatprep.subr.mxu0 0.0
      %504 = vmatpush2.msra.mxu0 0.0
      %505 = vmatprep.subr.mxu0 0.0
      %506 = vmatpush2.msra.mxu0 0.0
      %507 = vmatprep.subr.mxu0 0.0
      %508 = vmatpush2.msra.mxu0 0.0
      %509 = vmatprep.subr.mxu0 0.0
      %510 = vmatpush2.msra.mxu0 0.0
      %511 = vmatprep.subr.mxu0 0.0
      %512 = vmatpush2.msra.mxu0 0.0
      %513 = vmatprep.subr.mxu0 0.0
      %514 = vmatpush2.msra.mxu0 0.0
      %515 = vmatprep.subr.mxu0 0.0
      %516 = vmatpush2.msra.mxu0 0.0
      %517 = vmatprep.subr.mxu0 0.0
      %518 = vmatpush2.msra.mxu0 0.0
      %519 = vmatprep.subr.mxu0 0.0
      %520 = vmatpush2.msra.mxu0 0.0
      %521 = vmatprep.subr.mxu0 0.0
      %522 = vmatpush2.msra.mxu0 0.0
      %523 = vmatprep.subr.mxu0 0.0
      %524 = vmatpush2.msra.mxu0 0.0
      %525 = vmatprep.subr.mxu0 0.0
      %526 = vmatpush2.msra.mxu0 0.0
      %527 = vmatprep.subr.mxu0 0.0
      %528 = vmatpush2.msra.mxu0 0.0
      %529 = vmatprep.subr.mxu0 0.0
      %530 = vmatpush2.msra.mxu0 0.0
      %531 = vmatprep.subr.mxu0 0.0
      %532 = vmatpush2.msra.mxu0 0.0
      %533 = vmatprep.mubr.f32.mxu0 0.0
      %534 = vmatmul.mubr.f32.gmra.mxu0 %v467
      %v535 = vpop.f32.mrf.mxu0
      %v536 = vadd.f32 0.0, %v535
      %v537 = vpop.f32.mrf.mxu0
      %538 = vdwg.mxu0
      %v539 = vld [vmem:[#allocation2] sm:$0xff]
      %s540 = scalar_lea.vmem [#allocation2], 8
      %v541 = vld [vmem:[%s540] sm:$0xff]
      %s542 = scalar_lea.vmem [#allocation2], 16
      %v543 = vld [vmem:[%s542] sm:$0xff]
      %s544 = scalar_lea.vmem [#allocation2], 24
      %v545 = vld [vmem:[%s544] sm:$0xff]
      %s546 = scalar_lea.vmem [#allocation2], 32
      %v547 = vld [vmem:[%s546] sm:$0xff]
      %s548 = scalar_lea.vmem [#allocation2], 40
      %v549 = vld [vmem:[%s548] sm:$0xff]
      %s550 = scalar_lea.vmem [#allocation2], 48
      %v551 = vld [vmem:[%s550] sm:$0xff]
      %s552 = scalar_lea.vmem [#allocation2], 56
      %v553 = vld [vmem:[%s552] sm:$0xff]
      %v555 = vmul.f32 %v539, %v466
      %v556 = vsel %vm70, %v555, 0.0
      %557 = vadd.xlane.f32.xlu0 %v556
      %v558 = vpop.xlane.xlu0 %557
      %v559 = vmul.f32 %v541, %v466
      %v560 = vsel %vm70, %v559, 0.0
      %561 = vadd.xlane.f32.xlu0 %v560
      %v562 = vpop.xlane.xlu0 %561
      %v563 = vmul.f32 %v543, %v466
      %v564 = vsel %vm70, %v563, 0.0
      %565 = vadd.xlane.f32.xlu0 %v564
      %v566 = vpop.xlane.xlu0 %565
      %v567 = vmul.f32 %v545, %v466
      %v568 = vsel %vm70, %v567, 0.0
      %569 = vadd.xlane.f32.xlu0 %v568
      %v570 = vpop.xlane.xlu0 %569
      %v571 = vmul.f32 %v547, %v466
      %v572 = vsel %vm70, %v571, 0.0
      %573 = vadd.xlane.f32.xlu0 %v572
      %v574 = vpop.xlane.xlu0 %573
      %v575 = vmul.f32 %v549, %v466
      %v576 = vsel %vm70, %v575, 0.0
      %577 = vadd.xlane.f32.xlu0 %v576
      %v578 = vpop.xlane.xlu0 %577
      %v579 = vmul.f32 %v551, %v466
      %v580 = vsel %vm70, %v579, 0.0
      %581 = vadd.xlane.f32.xlu0 %v580
      %v582 = vpop.xlane.xlu0 %581
      %v583 = vmul.f32 %v553, %v466
      %v584 = vsel %vm70, %v583, 0.0
      %585 = vadd.xlane.f32.xlu0 %v584
      %v586 = vpop.xlane.xlu0 %585
      %vm587 = vcmask 7168
      %v588 = vsel %vm587, %v558, %v562
      %vm589 = vcmask 15360
      %v590 = vsel %vm589, %v588, %v566
      %vm591 = vcmask 23552
      %v592 = vsel %vm591, %v590, %v570
      %vm593 = vcmask 31744
      %v594 = vsel %vm593, %v592, %v574
      %vm595 = vcmask 39936
      %v596 = vsel %vm595, %v594, %v578
      %vm597 = vcmask 48128
      %v598 = vsel %vm597, %v596, %v582
      %vm599 = vcmask 56320
      %v600 = vsel %vm599, %v598, %v586
      %vm601 = vcmask 64512
      %v602 = vsel %vm601, %v600, -inf
      %603 = vmax.xlane.f32.xlu0 %v602
      %v604 = vpop.xlane.xlu0 %603
      %v605 = vsub.f32 %v600, %v604
      %v606 = vmul.f32 %v605, 1.442695
      %v607 = vpow.pop %v606
      %v608 = vsel %vm601, %v607, 0.0
      %609 = vadd.xlane.f32.xlu0 %v608
      %v610 = vpop.xlane.xlu0 %609
      %v611 = vrcp.pop %v610
      %v612 = vmul.f32 %v607, %v611
      %614 = vset.pattern.permute.xlu0 0
      %615 = vperm.xlu0 %614, %v612
      %v616 = vpop.permute.xlu0 %615
      %v618 = vmul.f32 %v616, %v539
      %619 = vset.pattern.permute.xlu0 1
      %620 = vperm.xlu0 %619, %v612
      %v621 = vpop.permute.xlu0 %620
      %v623 = vmul.f32 %v621, %v541
      %v624 = vadd.f32 %v618, %v623
      %625 = vset.pattern.permute.xlu0 2
      %626 = vperm.xlu0 %625, %v612
      %v627 = vpop.permute.xlu0 %626
      %v629 = vmul.f32 %v627, %v543
      %v630 = vadd.f32 %v624, %v629
      %631 = vset.pattern.permute.xlu0 3
      %632 = vperm.xlu0 %631, %v612
      %v633 = vpop.permute.xlu0 %632
      %v635 = vmul.f32 %v633, %v545
      %v636 = vadd.f32 %v630, %v635
      %637 = vset.pattern.permute.xlu0 4
      %638 = vperm.xlu0 %637, %v612
      %v639 = vpop.permute.xlu0 %638
      %v641 = vmul.f32 %v639, %v547
      %v642 = vadd.f32 %v636, %v641
      %643 = vset.pattern.permute.xlu0 5
      %644 = vperm.xlu0 %643, %v612
      %v645 = vpop.permute.xlu0 %644
      %v647 = vmul.f32 %v645, %v549
      %v648 = vadd.f32 %v642, %v647
      %649 = vset.pattern.permute.xlu0 6
      %650 = vperm.xlu0 %649, %v612
      %v651 = vpop.permute.xlu0 %650
      %v653 = vmul.f32 %v651, %v551
      %v654 = vadd.f32 %v648, %v653
      %655 = vset.pattern.permute.xlu0 7
      %656 = vperm.xlu0 %655, %v612
      %v657 = vpop.permute.xlu0 %656
      %v659 = vmul.f32 %v657, %v553
      %v660 = vadd.f32 %v654, %v659
      %v661 = vld [vmem:[%s9] sm:$0xff]
      %v662 = vld [vmem:[%s9 + $0x8] sm:$0xff]
      %v663 = vld [vmem:[%s9 + $0x10] sm:$0xff]
      %v664 = vld [vmem:[%s9 + $0x18] sm:$0xff]
      %v666 = vsel %vm70, %v660, 0
      %668 = vmatprep.subr.mxu0 0.0
      %669 = vmatpush1.msra.mxu0 0.0
      %670 = vmatprep.subr.mxu0 0.0
      %671 = vmatpush1.msra.mxu0 0.0
      %672 = vmatprep.subr.mxu0 0.0
      %673 = vmatpush1.msra.mxu0 0.0
      %674 = vmatprep.subr.mxu0 0.0
      %675 = vmatpush1.msra.mxu0 0.0
      %676 = vmatprep.subr.mxu0 0.0
      %677 = vmatpush1.msra.mxu0 0.0
      %678 = vmatprep.subr.mxu0 0.0
      %679 = vmatpush1.msra.mxu0 0.0
      %680 = vmatprep.subr.mxu0 0.0
      %681 = vmatpush1.msra.mxu0 0.0
      %682 = vmatprep.subr.mxu0 0.0
      %683 = vmatpush1.msra.mxu0 0.0
      %684 = vmatprep.subr.mxu0 0.0
      %685 = vmatpush1.msra.mxu0 0.0
      %686 = vmatprep.subr.mxu0 0.0
      %687 = vmatpush1.msra.mxu0 0.0
      %688 = vmatprep.subr.mxu0 0.0
      %689 = vmatpush1.msra.mxu0 0.0
      %690 = vmatprep.subr.mxu0 0.0
      %691 = vmatpush1.msra.mxu0 0.0
      %692 = vmatprep.subr.mxu0 0.0
      %693 = vmatpush1.msra.mxu0 %v664
      %694 = vmatprep.subr.mxu0 0.0
      %695 = vmatpush1.msra.mxu0 %v663
      %696 = vmatprep.subr.mxu0 0.0
      %697 = vmatpush1.msra.mxu0 %v662
      %698 = vmatprep.subr.mxu0 0.0
      %699 = vmatpush1.msra.mxu0 %v661
      %700 = vmatprep.subr.mxu0 0.0
      %701 = vmatpush2.msra.mxu0 0.0
      %702 = vmatprep.subr.mxu0 0.0
      %703 = vmatpush2.msra.mxu0 0.0
      %704 = vmatprep.subr.mxu0 0.0
      %705 = vmatpush2.msra.mxu0 0.0
      %706 = vmatprep.subr.mxu0 0.0
      %707 = vmatpush2.msra.mxu0 0.0
      %708 = vmatprep.subr.mxu0 0.0
      %709 = vmatpush2.msra.mxu0 0.0
      %710 = vmatprep.subr.mxu0 0.0
      %711 = vmatpush2.msra.mxu0 0.0
      %712 = vmatprep.subr.mxu0 0.0
      %713 = vmatpush2.msra.mxu0 0.0
      %714 = vmatprep.subr.mxu0 0.0
      %715 = vmatpush2.msra.mxu0 0.0
      %716 = vmatprep.subr.mxu0 0.0
      %717 = vmatpush2.msra.mxu0 0.0
      %718 = vmatprep.subr.mxu0 0.0
      %719 = vmatpush2.msra.mxu0 0.0
      %720 = vmatprep.subr.mxu0 0.0
      %721 = vmatpush2.msra.mxu0 0.0
      %722 = vmatprep.subr.mxu0 0.0
      %723 = vmatpush2.msra.mxu0 0.0
      %724 = vmatprep.subr.mxu0 0.0
      %725 = vmatpush2.msra.mxu0 0.0
      %726 = vmatprep.subr.mxu0 0.0
      %727 = vmatpush2.msra.mxu0 0.0
      %728 = vmatprep.subr.mxu0 0.0
      %729 = vmatpush2.msra.mxu0 0.0
      %730 = vmatprep.subr.mxu0 0.0
      %731 = vmatpush2.msra.mxu0 0.0
      %732 = vmatprep.mubr.f32.mxu0 0.0
      %733 = vmatmul.mubr.f32.gmra.mxu0 %v666
      %v734 = vpop.f32.mrf.mxu0
      %v735 = vadd.f32 0.0, %v734
      %v736 = vpop.f32.mrf.mxu0
      %737 = vdwg.mxu0
      %738 = vmatprep.subr.mxu0 0.0
      %739 = vmatpush1.msra.mxu0 %v373
      %740 = vmatprep.subr.mxu0 0.0
      %741 = vmatpush1.msra.mxu0 %v372
      %742 = vmatprep.subr.mxu0 0.0
      %743 = vmatpush1.msra.mxu0 %v371
      %744 = vmatprep.subr.mxu0 0.0
      %745 = vmatpush1.msra.mxu0 %v370
      %746 = vmatprep.subr.mxu0 0.0
      %747 = vmatpush1.msra.mxu0 %v369
      %748 = vmatprep.subr.mxu0 0.0
      %749 = vmatpush1.msra.mxu0 %v368
      %750 = vmatprep.subr.mxu0 0.0
      %751 = vmatpush1.msra.mxu0 %v367
      %752 = vmatprep.subr.mxu0 0.0
      %753 = vmatpush1.msra.mxu0 %v366
      %754 = vmatprep.subr.mxu0 0.0
      %755 = vmatpush1.msra.mxu0 %v365
      %756 = vmatprep.subr.mxu0 0.0
      %757 = vmatpush1.msra.mxu0 %v364
      %758 = vmatprep.subr.mxu0 0.0
      %759 = vmatpush1.msra.mxu0 %v363
      %760 = vmatprep.subr.mxu0 0.0
      %761 = vmatpush1.msra.mxu0 %v362
      %762 = vmatprep.subr.mxu0 0.0
      %763 = vmatpush1.msra.mxu0 %v361
      %764 = vmatprep.subr.mxu0 0.0
      %765 = vmatpush1.msra.mxu0 %v360
      %766 = vmatprep.subr.mxu0 0.0
      %767 = vmatpush1.msra.mxu0 %v359
      %768 = vmatprep.subr.mxu0 0.0
      %769 = vmatpush1.msra.mxu0 %v358
      %770 = vmatprep.subr.mxu0 0.0
      %771 = vmatpush2.msra.mxu0 0.0
      %772 = vmatprep.subr.mxu0 0.0
      %773 = vmatpush2.msra.mxu0 0.0
      %774 = vmatprep.subr.mxu0 0.0
      %775 = vmatpush2.msra.mxu0 0.0
      %776 = vmatprep.subr.mxu0 0.0
      %777 = vmatpush2.msra.mxu0 0.0
      %778 = vmatprep.subr.mxu0 0.0
      %779 = vmatpush2.msra.mxu0 0.0
      %780 = vmatprep.subr.mxu0 0.0
      %781 = vmatpush2.msra.mxu0 0.0
      %782 = vmatprep.subr.mxu0 0.0
      %783 = vmatpush2.msra.mxu0 0.0
      %784 = vmatprep.subr.mxu0 0.0
      %785 = vmatpush2.msra.mxu0 0.0
      %786 = vmatprep.subr.mxu0 0.0
      %787 = vmatpush2.msra.mxu0 0.0
      %788 = vmatprep.subr.mxu0 0.0
      %789 = vmatpush2.msra.mxu0 0.0
      %790 = vmatprep.subr.mxu0 0.0
      %791 = vmatpush2.msra.mxu0 0.0
      %792 = vmatprep.subr.mxu0 0.0
      %793 = vmatpush2.msra.mxu0 0.0
      %794 = vmatprep.subr.mxu0 0.0
      %795 = vmatpush2.msra.mxu0 0.0
      %796 = vmatprep.subr.mxu0 0.0
      %797 = vmatpush2.msra.mxu0 0.0
      %798 = vmatprep.subr.mxu0 0.0
      %799 = vmatpush2.msra.mxu0 0.0
      %800 = vmatprep.subr.mxu0 0.0
      %801 = vmatpush2.msra.mxu0 0.0
      %802 = vmatprep.mubr.f32.mxu0 0.0
      %803 = vmatmul.mubr.f32.gmra.mxu0 %v357
      %v804 = vpop.f32.mrf.mxu0
      %v805 = vadd.f32 %v735, %v804
      %v806 = vpop.f32.mrf.mxu0
      %807 = vdwg.mxu0
      %v808 = vld [vmem:[%s10] sm:$0x1]
      %v810 = vlaneseq
      %v811 = vshrl.u32 %v810, 7
      %v812 = vsub.s32 0, %v811
      %v813 = vrot.slane %v808, %v812
      %v815 = vadd.f32 %v805, %v813
      %v816 = vld [vmem:[%s11] sm:$0x1]
      %v817 = vadd.f32 %v815, %v536
      %v818 = vxor.u32 %v817, 2147483648
      %v819 = vmul.f32 %v818, 1.442695
      %v820 = vpow.pop %v819
      %v821 = vadd.f32 %v820, 1.0
      %v822 = vrcp.pop %v821
      %v823 = vmul.f32 1.0, %v822
      %v825 = vlaneseq
      %v826 = vshrl.u32 %v825, 7
      %v827 = vsub.s32 0, %v826
      %v828 = vrot.slane %v816, %v827
      %829 = vrot.lane.b32.xlu0 %v828, 64
      %v830 = vpop.permute.xlu0 %829
      %v832 = vadd.f32 %v536, %v830
      %834 = vrot.lane.b32.xlu0 %v832, 64
      %v835 = vpop.permute.xlu0 %834
      %v837 = vmul.f32 %v823, %v835
      %839 = vrot.lane.b32.xlu0 %v837, 64
      %v840 = vpop.permute.xlu0 %839
      %v842 = vadd.f32 %v815, %v840
      %v843 = vtanh.pop %v842
      %v844 = vsub.f32 1.0, %v823
      %846 = vrot.lane.b32.xlu0 %v843, 96
      %v847 = vpop.permute.xlu0 %846
      %v849 = vmul.f32 %v844, %v847
      %v850 = vmul.f32 %v823, %v356
      %v851 = vadd.f32 %v849, %v850
      %v852 = vld [vmem:[%s12] sm:$0xff]
      %v853 = vld [vmem:[%s12 + $0x8] sm:$0xff]
      %v854 = vld [vmem:[%s12 + $0x10] sm:$0xff]
      %v855 = vld [vmem:[%s12 + $0x18] sm:$0xff]
      %v856 = vld [vmem:[%s13] sm:$0xff]
      %v857 = vld [vmem:[%s13 + $0x8] sm:$0xff]
      %v858 = vld [vmem:[%s13 + $0x10] sm:$0xff]
      %v859 = vld [vmem:[%s13 + $0x18] sm:$0xff]
      %860 = vmatprep.subr.mxu0 0.0
      %861 = vmatpush1.msra.mxu0 0.0
      %862 = vmatprep.subr.mxu0 0.0
      %863 = vmatpush1.msra.mxu0 0.0
      %864 = vmatprep.subr.mxu0 0.0
      %865 = vmatpush1.msra.mxu0 0.0
      %866 = vmatprep.subr.mxu0 0.0
      %867 = vmatpush1.msra.mxu0 0.0
      %868 = vmatprep.subr.mxu0 0.0
      %869 = vmatpush1.msra.mxu0 0.0
      %870 = vmatprep.subr.mxu0 0.0
      %871 = vmatpush1.msra.mxu0 0.0
      %872 = vmatprep.subr.mxu0 0.0
      %873 = vmatpush1.msra.mxu0 0.0
      %874 = vmatprep.subr.mxu0 0.0
      %875 = vmatpush1.msra.mxu0 0.0
      %876 = vmatprep.subr.mxu0 0.0
      %877 = vmatpush1.msra.mxu0 0.0
      %878 = vmatprep.subr.mxu0 0.0
      %879 = vmatpush1.msra.mxu0 0.0
      %880 = vmatprep.subr.mxu0 0.0
      %881 = vmatpush1.msra.mxu0 0.0
      %882 = vmatprep.subr.mxu0 0.0
      %883 = vmatpush1.msra.mxu0 0.0
      %884 = vmatprep.subr.mxu0 0.0
      %885 = vmatpush1.msra.mxu0 %v859
      %886 = vmatprep.subr.mxu0 0.0
      %887 = vmatpush1.msra.mxu0 %v858
      %888 = vmatprep.subr.mxu0 0.0
      %889 = vmatpush1.msra.mxu0 %v857
      %890 = vmatprep.subr.mxu0 0.0
      %891 = vmatpush1.msra.mxu0 %v856
      %892 = vmatprep.subr.mxu0 0.0
      %893 = vmatpush2.msra.mxu0 0.0
      %894 = vmatprep.subr.mxu0 0.0
      %895 = vmatpush2.msra.mxu0 0.0
      %896 = vmatprep.subr.mxu0 0.0
      %897 = vmatpush2.msra.mxu0 0.0
      %898 = vmatprep.subr.mxu0 0.0
      %899 = vmatpush2.msra.mxu0 0.0
      %900 = vmatprep.subr.mxu0 0.0
      %901 = vmatpush2.msra.mxu0 0.0
      %902 = vmatprep.subr.mxu0 0.0
      %903 = vmatpush2.msra.mxu0 0.0
      %904 = vmatprep.subr.mxu0 0.0
      %905 = vmatpush2.msra.mxu0 0.0
      %906 = vmatprep.subr.mxu0 0.0
      %907 = vmatpush2.msra.mxu0 0.0
      %908 = vmatprep.subr.mxu0 0.0
      %909 = vmatpush2.msra.mxu0 0.0
      %910 = vmatprep.subr.mxu0 0.0
      %911 = vmatpush2.msra.mxu0 0.0
      %912 = vmatprep.subr.mxu0 0.0
      %913 = vmatpush2.msra.mxu0 0.0
      %914 = vmatprep.subr.mxu0 0.0
      %915 = vmatpush2.msra.mxu0 0.0
      %916 = vmatprep.subr.mxu0 0.0
      %917 = vmatpush2.msra.mxu0 0.0
      %918 = vmatprep.subr.mxu0 0.0
      %919 = vmatpush2.msra.mxu0 0.0
      %920 = vmatprep.subr.mxu0 0.0
      %921 = vmatpush2.msra.mxu0 0.0
      %922 = vmatprep.subr.mxu0 0.0
      %923 = vmatpush2.msra.mxu0 0.0
      %924 = vmatprep.mubr.f32.mxu0 0.0
      %925 = vmatmul.mubr.f32.gmra.mxu0 %v666
      %v926 = vpop.f32.mrf.mxu0
      %v927 = vadd.f32 0.0, %v926
      %v928 = vpop.f32.mrf.mxu0
      %929 = vdwg.mxu0
      %931 = vrot.lane.b32.xlu0 %v851, 96
      %v932 = vpop.permute.xlu0 %931
      %v933 = vsel %vm70, %v932, 0
      %935 = vmatprep.subr.mxu0 0.0
      %936 = vmatpush1.msra.mxu0 0.0
      %937 = vmatprep.subr.mxu0 0.0
      %938 = vmatpush1.msra.mxu0 0.0
      %939 = vmatprep.subr.mxu0 0.0
      %940 = vmatpush1.msra.mxu0 0.0
      %941 = vmatprep.subr.mxu0 0.0
      %942 = vmatpush1.msra.mxu0 0.0
      %943 = vmatprep.subr.mxu0 0.0
      %944 = vmatpush1.msra.mxu0 0.0
      %945 = vmatprep.subr.mxu0 0.0
      %946 = vmatpush1.msra.mxu0 0.0
      %947 = vmatprep.subr.mxu0 0.0
      %948 = vmatpush1.msra.mxu0 0.0
      %949 = vmatprep.subr.mxu0 0.0
      %950 = vmatpush1.msra.mxu0 0.0
      %951 = vmatprep.subr.mxu0 0.0
      %952 = vmatpush1.msra.mxu0 0.0
      %953 = vmatprep.subr.mxu0 0.0
      %954 = vmatpush1.msra.mxu0 0.0
      %955 = vmatprep.subr.mxu0 0.0
      %956 = vmatpush1.msra.mxu0 0.0
      %957 = vmatprep.subr.mxu0 0.0
      %958 = vmatpush1.msra.mxu0 0.0
      %959 = vmatprep.subr.mxu0 0.0
      %960 = vmatpush1.msra.mxu0 %v855
      %961 = vmatprep.subr.mxu0 0.0
      %962 = vmatpush1.msra.mxu0 %v854
      %963 = vmatprep.subr.mxu0 0.0
      %964 = vmatpush1.msra.mxu0 %v853
      %965 = vmatprep.subr.mxu0 0.0
      %966 = vmatpush1.msra.mxu0 %v852
      %967 = vmatprep.subr.mxu0 0.0
      %968 = vmatpush2.msra.mxu0 0.0
      %969 = vmatprep.subr.mxu0 0.0
      %970 = vmatpush2.msra.mxu0 0.0
      %971 = vmatprep.subr.mxu0 0.0
      %972 = vmatpush2.msra.mxu0 0.0
      %973 = vmatprep.subr.mxu0 0.0
      %974 = vmatpush2.msra.mxu0 0.0
      %975 = vmatprep.subr.mxu0 0.0
      %976 = vmatpush2.msra.mxu0 0.0
      %977 = vmatprep.subr.mxu0 0.0
      %978 = vmatpush2.msra.mxu0 0.0
      %979 = vmatprep.subr.mxu0 0.0
      %980 = vmatpush2.msra.mxu0 0.0
      %981 = vmatprep.subr.mxu0 0.0
      %982 = vmatpush2.msra.mxu0 0.0
      %983 = vmatprep.subr.mxu0 0.0
      %984 = vmatpush2.msra.mxu0 0.0
      %985 = vmatprep.subr.mxu0 0.0
      %986 = vmatpush2.msra.mxu0 0.0
      %987 = vmatprep.subr.mxu0 0.0
      %988 = vmatpush2.msra.mxu0 0.0
      %989 = vmatprep.subr.mxu0 0.0
      %990 = vmatpush2.msra.mxu0 0.0
      %991 = vmatprep.subr.mxu0 0.0
      %992 = vmatpush2.msra.mxu0 0.0
      %993 = vmatprep.subr.mxu0 0.0
      %994 = vmatpush2.msra.mxu0 0.0
      %995 = vmatprep.subr.mxu0 0.0
      %996 = vmatpush2.msra.mxu0 0.0
      %997 = vmatprep.subr.mxu0 0.0
      %998 = vmatpush2.msra.mxu0 0.0
      %999 = vmatprep.mubr.f32.mxu0 0.0
      %1000 = vmatmul.mubr.f32.gmra.mxu0 %v933
      %v1001 = vpop.f32.mrf.mxu0
      %v1002 = vadd.f32 %v927, %v1001
      %v1003 = vpop.f32.mrf.mxu0
      %1004 = vdwg.mxu0
      %v1005 = vadd.f32 %v1002, %v457
      %v1006 = vld [vmem:[%s14] sm:$0x1]
      %v1008 = vlaneseq
      %v1009 = vshrl.u32 %v1008, 7
      %v1010 = vsub.s32 0, %v1009
      %v1011 = vrot.slane %v1006, %v1010
      %v1013 = vadd.f32 %v1005, %v1011
      %s1014 = smul.u32 %s351, 8
      %s1015 = scalar_lea.vmem [#allocation4], %s1014
      %1016 = vst [vmem:[%s1015] sm:$0xff] %v1013
      %v1017 = vsel %vm342, %v1013, -1e+30
      %1018 = vmax.xlane.f32.xlu0 %v1017
      %v1019 = vpop.xlane.xlu0 %1018
      %vm1020 = vcmp.eq.f32.partialorder %v1017, %v1019
      %v1021 = vsel %vm1020, %v341, 128
      %v1022 = vand.u32 %v1021, 65535
      %v1023 = vshra.s32 %v1021, 16
      %v1024 = vcvt.s32.f32 %v1022
      %v1025 = vcvt.s32.f32 %v1023
      %1026 = vmin.xlane.f32.xlu0 %v1025
      %v1027 = vpop.xlane.xlu0 %1026
      %vm1028 = vcmp.eq.f32.partialorder %v1025, %v1027
      %v1029 = vsel %vm1028, %v1024, inf
      %1030 = vmin.xlane.f32.xlu0 %v1029
      %v1031 = vpop.xlane.xlu0 %1030
      %v1032 = vcvt.f32.s32 %v1031
      %v1033 = vcvt.f32.s32 %v1027
      %v1034 = vshll.u32 %v1033, 16
      %v1035 = vadd.s32 %v1034, %v1032
      %vm1036 = vcmp.eq.s32.totalorder %v341, %v1035
      %v1037 = vsel %vm1036, 1, 0
      %v1038 = vcvt.s32.f32 %v1037
    $region73: #{seq2seq_forward.1} parent=1 // loop_footer
      %s355 = sadd.s32 1, %s351
    $region74: #{seq2seq_forward.1} parent=1 // loop_footer_branch
      %350 = sbr.rel target = $region70
    $region75: #{seq2seq_forward.1} parent=1 // loop_exit
      _
    // Predicated region
    $region76: #{seq2seq_forward.1} parent=1 // pred_check
      _
    $region77: #{seq2seq_forward.1} parent=1 // pred_check_branch
      %1040 = sbr.rel (0) target = $region79
    $region78: #{seq2seq_forward.1} parent=1 // pred_region
      %s1042 = ssub.s32 1024, 1024
      %1043 = vsyncadd [#allocation5], %s1042
      %s1044 = sshll.u32 [#allocation4], 4
      %s1045 = int_to_ptr.vmem [resolvable:$true] %s1044
      %1050 = dma.vmem_to_hbm [thread:$0]  %s1045, 1024, %s15, [#allocation5], 128, 128, 8
    $region79: #{seq2seq_forward.1} parent=1 // pred_fallthru
      _
    // Predicated region
    $region80: #{seq2seq_forward.1} parent=1 // pred_check
      _
    $region81: #{seq2seq_forward.1} parent=1 // pred_check_branch
      %1052 = sbr.rel (0) target = $region83
    $region82: #{seq2seq_forward.1} parent=1 // pred_region
      %1053 = dma.done [#allocation5], 1024
    $region83: #{seq2seq_forward.1} parent=1 // pred_fallthru
      _
    %1054 = vsyncpa [#allocation5], 1

</llo_original>
